<compile_context>
chip_gen: v7x
topology: tpu7x:2x2x1
jax: 0.10.0
libtpu: 0.0.40
codegen_flags: <defaults>
</compile_context>

<pallas_src>
import math
import functools

import jax
import jax.numpy as jnp
import numpy as np
from jax.experimental import pallas as pl
from jax.experimental.pallas import tpu as pltpu

E = 32          # embed dim
H = 4           # num heads
D = E // H      # head dim = 8


def _make_mha_kernel(B, S):
    """Kernel factory: B, S are static (captured by closure)."""

    def mha_kernel(x_ref, wqkv_ref, bqkv_ref, wot_ref, bo_ref,
                   out_ref, attnw_ref, ctx_ref):
        # Single invocation: everything is resident in VMEM.
        x = x_ref[...]                                              # (B*S, E)

        # Fused QKV projection: one MXU push, N = 3E = 96 lanes.
        # Columns are head-grouped: [q_h | k_h | v_h] per head (24-lane groups).
        qkv = jnp.dot(x, wqkv_ref[...],
                      preferred_element_type=jnp.float32) + bqkv_ref[...]   # (B*S, 3E)

        inv_h = 1.0 / H

        # B and H are tiny & static -> fully unrolled Python loops.
        for b in range(B):
            r0 = b * S                    # multiple of 8 -> sublane-aligned row slices
            attn_sum = jnp.zeros((S, S), jnp.float32)
            for h in range(H):
                base = h * 3 * D          # contiguous 24-lane group for this head
                qh = qkv[r0:r0 + S, base:base + D]              # (S, D), scale folded in
                kh = qkv[r0:r0 + S, base + D:base + 2 * D]      # (S, D)
                vh = qkv[r0:r0 + S, base + 2 * D:base + 3 * D]  # (S, D)

                # q @ k^T by contracting the last dims (no explicit transpose op).
                s = jax.lax.dot_general(qh, kh, (((1,), (1,)), ((), ())),
                                        preferred_element_type=jnp.float32)   # (S, S)
                s = s - jnp.max(s, axis=-1, keepdims=True)
                p = jnp.exp(s)
                denom = jnp.sum(p, axis=-1, keepdims=True)
                # EUP approx reciprocal + one Newton step -> full f32 accuracy,
                # no VPU divide on the critical path.
                r = pl.reciprocal(denom, approx=True)
                r = r * (2.0 - denom * r)
                p = p * r

                attn_sum = attn_sum + p

                # Stash this head's context into the shared ctx scratch; the
                # output projection is done ONCE below for all batches/heads.
                ctx_ref[r0:r0 + S, h * D:(h + 1) * D] = jnp.dot(
                    p, vh, preferred_element_type=jnp.float32)

            # Lane-flat 2-D weights store (sublane-aligned row slice).
            attnw_ref[r0:r0 + S, :] = (attn_sum * inv_h).astype(attnw_ref.dtype)

        # Single fused output projection + single bias add for the whole problem.
        out_ref[...] = (jnp.dot(ctx_ref[...], wot_ref[...],
                                preferred_element_type=jnp.float32)
                        + bo_ref[...]).astype(out_ref.dtype)

    return mha_kernel


def fuse_mha_params(in_proj_weight, in_proj_bias, out_proj_weight, out_proj_bias):
    """One-time host-side parameter fusion (do NOT call per step).

    Returns (w_qkv, b_qkv, wo_t, bo) where
      w_qkv : (E, 3E)  x @ w_qkv gives head-grouped [q_h|k_h|v_h] columns,
               with the 1/sqrt(D) softmax scale folded into the Q part.
      b_qkv : (1, 3E)  matching bias (same column order / scale fold).
      wo_t  : (E, E)   out_proj_weight.T (kernel does ctx @ wo_t).
      bo    : (1, E)   out_proj bias.
    """
    scale = 1.0 / math.sqrt(D)

    wq = in_proj_weight[0:E]
    wk = in_proj_weight[E:2 * E]
    wv = in_proj_weight[2 * E:3 * E]
    bq = in_proj_bias[0:E]
    bk = in_proj_bias[E:2 * E]
    bv = in_proj_bias[2 * E:3 * E]

    # Standard [Q | K | V] fused layout first (pre-transposed, scale folded).
    w_std = jnp.concatenate([(wq * scale).T, wk.T, wv.T], axis=1)     # (E, 3E)
    b_std = jnp.concatenate([bq * scale, bk, bv])                     # (3E,)

    # Permute columns so each head's (q, k, v) triple is contiguous:
    # new col [h*3D + part*D + d]  <-  old col [part*E + h*D + d]
    perm = np.empty(3 * E, dtype=np.int32)
    for h in range(H):
        for part in range(3):
            for d in range(D):
                perm[h * 3 * D + part * D + d] = part * E + h * D + d
    perm = jnp.asarray(perm)

    w_qkv = w_std[:, perm]                                            # (E, 3E)
    b_qkv = b_std[perm].reshape(1, 3 * E)                             # (1, 3E)
    wo_t = out_proj_weight.T                                          # (E, E)
    bo = out_proj_bias.reshape(1, E)                                  # (1, E)
    return w_qkv, b_qkv, wo_t, bo


@jax.jit
def mha_forward(x, w_qkv, b_qkv, wo_t, bo):
    """x: (B, S, E); fused params from fuse_mha_params."""
    B, S, _ = x.shape
    x2 = x.reshape(B * S, E)                                          # free reshape in XLA

    cost = pl.CostEstimate(
        flops=(2 * B * S * E * 3 * E          # fused QKV projection
               + 4 * B * H * S * S * D        # scores + context
               + 2 * B * S * E * E),          # fused output projection
        transcendentals=B * H * S * S + B * H * S,
        bytes_accessed=4 * (B * S * E + E * 3 * E + 3 * E + E * E + E
                            + B * S * E + B * S * S),
    )

    out2, attn_w2 = pl.pallas_call(
        _make_mha_kernel(B, S),
        out_shape=(
            jax.ShapeDtypeStruct((B * S, E), x.dtype),      # attn_output (flattened)
            jax.ShapeDtypeStruct((B * S, S), jnp.float32),  # head-avg attn weights (flat)
        ),
        scratch_shapes=[pltpu.VMEM((B * S, E), jnp.float32)],   # per-head ctx staging
        cost_estimate=cost,
    )(x2, w_qkv, b_qkv, wo_t, bo)

    return out2.reshape(B, S, E), attn_w2.reshape(B, S, S)


def multihead_self_attention(x, in_proj_weight, in_proj_bias,
                             out_proj_weight, out_proj_bias):
    """Convenience wrapper matching torch.nn.MultiheadAttention parameter layout."""
    fused = fuse_mha_params(in_proj_weight, in_proj_bias,
                            out_proj_weight, out_proj_bias)
    return mha_forward(x, *fused)


def reference_mha(x, in_proj_weight, in_proj_bias, out_proj_weight, out_proj_bias):
    B, S, _ = x.shape
    wq = in_proj_weight[0:E]
    wk = in_proj_weight[E:2 * E]
    wv = in_proj_weight[2 * E:3 * E]
    bq = in_proj_bias[0:E]
    bk = in_proj_bias[E:2 * E]
    bv = in_proj_bias[2 * E:3 * E]

    q = x @ wq.T + bq
    k = x @ wk.T + bk
    v = x @ wv.T + bv
    qh = q.reshape(B, S, H, D).transpose(0, 2, 1, 3)
    kh = k.reshape(B, S, H, D).transpose(0, 2, 1, 3)
    vh = v.reshape(B, S, H, D).transpose(0, 2, 1, 3)
    s = jnp.einsum("bhqd,bhkd->bhqk", qh, kh) / math.sqrt(D)
    p = jax.nn.softmax(s, axis=-1)
    ctx = jnp.einsum("bhqk,bhkd->bhqd", p, vh).transpose(0, 2, 1, 3).reshape(B, S, E)
    out = ctx @ out_proj_weight.T + out_proj_bias
    return out, p.mean(axis=1)


if __name__ == "__main__":
    key = jax.random.PRNGKey(0)
    kx, kin, kbin, kwo, kbo = jax.random.split(key, 5)

    B, S = 2, 8
    x = jax.random.normal(kx, (B, S, E), dtype=jnp.float32)

    # Deterministic parameter init (nn.MultiheadAttention parameter shapes).
    in_proj_weight = jax.random.normal(kin, (3 * E, E), dtype=jnp.float32) * 0.1
    in_proj_bias = jax.random.normal(kbin, (3 * E,), dtype=jnp.float32) * 0.1
    out_proj_weight = jax.random.normal(kwo, (E, E), dtype=jnp.float32) * 0.1
    out_proj_bias = jax.random.normal(kbo, (E,), dtype=jnp.float32) * 0.1

    # One-time host-side fusion, then the jitted forward only dispatches the kernel.
    fused = fuse_mha_params(in_proj_weight, in_proj_bias,
                            out_proj_weight, out_proj_bias)
    fused = jax.block_until_ready(fused)

    out, attn_w = mha_forward(x, *fused)
    jax.block_until_ready((out, attn_w))

    ref_out, ref_w = reference_mha(x, in_proj_weight, in_proj_bias,
                                   out_proj_weight, out_proj_bias)
    assert jnp.allclose(out, ref_out, atol=1e-4, rtol=1e-4), "output mismatch"
    assert jnp.allclose(attn_w, ref_w, atol=1e-4, rtol=1e-4), "attn weights mismatch"

    print("KERNEL_OK")
</pallas_src>

<mosaic_0001>
module attributes {stable_mosaic.version = 11 : i64} {
  func.func @mha_kernel(%arg0: memref<16x32xf32, #tpu.memory_space<vmem>>, %arg1: memref<32x96xf32, #tpu.memory_space<vmem>>, %arg2: memref<1x96xf32, #tpu.memory_space<vmem>>, %arg3: memref<32x32xf32, #tpu.memory_space<vmem>>, %arg4: memref<1x32xf32, #tpu.memory_space<vmem>>, %arg5: memref<16x32xf32, #tpu.memory_space<vmem>>, %arg6: memref<16x8xf32, #tpu.memory_space<vmem>>, %arg7: memref<16x32xf32, #tpu.memory_space<vmem>>) attributes {dimension_semantics = [], scalar_prefetch = 0 : i64, scratch_operands = 1 : i64, tpu.core_type = #tpu.core_type<tc>} {
    %c0 = arith.constant 0 : index
    %c0_0 = arith.constant 0 : index
    %0 = vector.load %arg0[%c0, %c0_0] : memref<16x32xf32, #tpu.memory_space<vmem>>, vector<16x32xf32>
    %c0_1 = arith.constant 0 : index
    %c0_2 = arith.constant 0 : index
    %1 = vector.load %arg1[%c0_1, %c0_2] : memref<32x96xf32, #tpu.memory_space<vmem>>, vector<32x96xf32>
    %cst = arith.constant dense<0.000000e+00> : vector<16x96xf32>
    %2 = tpu.matmul %0, %1, %cst {dimension_numbers = #tpu.dot_dimension_numbers<[1], [0], [0], [1], [0, 0, 1, 1], [], []>} : vector<16x32xf32>, vector<32x96xf32>, vector<16x96xf32> -> vector<16x96xf32>
    %c0_3 = arith.constant 0 : index
    %c0_4 = arith.constant 0 : index
    %3 = vector.load %arg2[%c0_3, %c0_4] : memref<1x96xf32, #tpu.memory_space<vmem>>, vector<1x96xf32>
    %4 = vector.broadcast %3 : vector<1x96xf32> to vector<16x96xf32>
    %5 = arith.addf %2, %4 : vector<16x96xf32>
    %cst_5 = arith.constant 0.000000e+00 : f32
    %6 = vector.broadcast %cst_5 : f32 to vector<8x8xf32>
    %7 = vector.extract_strided_slice %5 {offsets = [0, 0], sizes = [8, 8], strides = [1, 1]} : vector<16x96xf32> to vector<8x8xf32>
    %8 = vector.extract_strided_slice %5 {offsets = [0, 8], sizes = [8, 8], strides = [1, 1]} : vector<16x96xf32> to vector<8x8xf32>
    %9 = vector.extract_strided_slice %5 {offsets = [0, 16], sizes = [8, 8], strides = [1, 1]} : vector<16x96xf32> to vector<8x8xf32>
    %cst_6 = arith.constant dense<0.000000e+00> : vector<8x8xf32>
    %10 = tpu.matmul %7, %8, %cst_6 {dimension_numbers = #tpu.dot_dimension_numbers<[1], [1], [0], [0], [0, 0, 1, 0], [], []>} : vector<8x8xf32>, vector<8x8xf32>, vector<8x8xf32> -> vector<8x8xf32>
    %cst_7 = arith.constant dense<0xFF800000> : vector<8xf32>
    %11 = vector.multi_reduction <maximumf>, %10, %cst_7 [1] : vector<8x8xf32> to vector<8xf32>
    %12 = vector.shape_cast %11 : vector<8xf32> to vector<8x1xf32>
    %13 = vector.broadcast %12 : vector<8x1xf32> to vector<8x8xf32>
    %14 = arith.subf %10, %13 : vector<8x8xf32>
    %15 = math.exp %14 : vector<8x8xf32>
    %cst_8 = arith.constant dense<0.000000e+00> : vector<8xf32>
    %16 = vector.multi_reduction <add>, %15, %cst_8 [1] : vector<8x8xf32> to vector<8xf32>
    %17 = vector.shape_cast %16 : vector<8xf32> to vector<8x1xf32>
    %18 = tpu.reciprocal %17 {approx = true} : vector<8x1xf32> -> vector<8x1xf32>
    %19 = arith.mulf %17, %18 : vector<8x1xf32>
    %cst_9 = arith.constant 2.000000e+00 : f32
    %20 = vector.broadcast %cst_9 : f32 to vector<8x1xf32>
    %21 = arith.subf %20, %19 : vector<8x1xf32>
    %22 = arith.mulf %18, %21 : vector<8x1xf32>
    %23 = vector.broadcast %22 : vector<8x1xf32> to vector<8x8xf32>
    %24 = arith.mulf %15, %23 : vector<8x8xf32>
    %25 = arith.addf %6, %24 : vector<8x8xf32>
    %cst_10 = arith.constant dense<0.000000e+00> : vector<8x8xf32>
    %26 = tpu.matmul %24, %9, %cst_10 {dimension_numbers = #tpu.dot_dimension_numbers<[1], [0], [0], [1], [0, 0, 1, 1], [], []>} : vector<8x8xf32>, vector<8x8xf32>, vector<8x8xf32> -> vector<8x8xf32>
    %c0_11 = arith.constant 0 : index
    %c0_12 = arith.constant 0 : index
    %27 = vector.load %arg7[%c0_11, %c0_12] : memref<16x32xf32, #tpu.memory_space<vmem>>, vector<8x8xf32>
    tpu.vector_store %arg7[%c0_11, %c0_12], %26 {strides = array<i32>} : memref<16x32xf32, #tpu.memory_space<vmem>>, vector<8x8xf32>,
    %28 = vector.extract_strided_slice %5 {offsets = [0, 24], sizes = [8, 8], strides = [1, 1]} : vector<16x96xf32> to vector<8x8xf32>
    %29 = vector.extract_strided_slice %5 {offsets = [0, 32], sizes = [8, 8], strides = [1, 1]} : vector<16x96xf32> to vector<8x8xf32>
    %30 = vector.extract_strided_slice %5 {offsets = [0, 40], sizes = [8, 8], strides = [1, 1]} : vector<16x96xf32> to vector<8x8xf32>
    %cst_13 = arith.constant dense<0.000000e+00> : vector<8x8xf32>
    %31 = tpu.matmul %28, %29, %cst_13 {dimension_numbers = #tpu.dot_dimension_numbers<[1], [1], [0], [0], [0, 0, 1, 0], [], []>} : vector<8x8xf32>, vector<8x8xf32>, vector<8x8xf32> -> vector<8x8xf32>
    %cst_14 = arith.constant dense<0xFF800000> : vector<8xf32>
    %32 = vector.multi_reduction <maximumf>, %31, %cst_14 [1] : vector<8x8xf32> to vector<8xf32>
    %33 = vector.shape_cast %32 : vector<8xf32> to vector<8x1xf32>
    %34 = vector.broadcast %33 : vector<8x1xf32> to vector<8x8xf32>
    %35 = arith.subf %31, %34 : vector<8x8xf32>
    %36 = math.exp %35 : vector<8x8xf32>
    %cst_15 = arith.constant dense<0.000000e+00> : vector<8xf32>
    %37 = vector.multi_reduction <add>, %36, %cst_15 [1] : vector<8x8xf32> to vector<8xf32>
    %38 = vector.shape_cast %37 : vector<8xf32> to vector<8x1xf32>
    %39 = tpu.reciprocal %38 {approx = true} : vector<8x1xf32> -> vector<8x1xf32>
    %40 = arith.mulf %38, %39 : vector<8x1xf32>
    %cst_16 = arith.constant 2.000000e+00 : f32
    %41 = vector.broadcast %cst_16 : f32 to vector<8x1xf32>
    %42 = arith.subf %41, %40 : vector<8x1xf32>
    %43 = arith.mulf %39, %42 : vector<8x1xf32>
    %44 = vector.broadcast %43 : vector<8x1xf32> to vector<8x8xf32>
    %45 = arith.mulf %36, %44 : vector<8x8xf32>
    %46 = arith.addf %25, %45 : vector<8x8xf32>
    %cst_17 = arith.constant dense<0.000000e+00> : vector<8x8xf32>
    %47 = tpu.matmul %45, %30, %cst_17 {dimension_numbers = #tpu.dot_dimension_numbers<[1], [0], [0], [1], [0, 0, 1, 1], [], []>} : vector<8x8xf32>, vector<8x8xf32>, vector<8x8xf32> -> vector<8x8xf32>
    %c0_18 = arith.constant 0 : index
    %c8 = arith.constant 8 : index
    %48 = vector.load %arg7[%c0_18, %c8] : memref<16x32xf32, #tpu.memory_space<vmem>>, vector<8x8xf32>
    tpu.vector_store %arg7[%c0_18, %c8], %47 {strides = array<i32>} : memref<16x32xf32, #tpu.memory_space<vmem>>, vector<8x8xf32>,
    %49 = vector.extract_strided_slice %5 {offsets = [0, 48], sizes = [8, 8], strides = [1, 1]} : vector<16x96xf32> to vector<8x8xf32>
    %50 = vector.extract_strided_slice %5 {offsets = [0, 56], sizes = [8, 8], strides = [1, 1]} : vector<16x96xf32> to vector<8x8xf32>
    %51 = vector.extract_strided_slice %5 {offsets = [0, 64], sizes = [8, 8], strides = [1, 1]} : vector<16x96xf32> to vector<8x8xf32>
    %cst_19 = arith.constant dense<0.000000e+00> : vector<8x8xf32>
    %52 = tpu.matmul %49, %50, %cst_19 {dimension_numbers = #tpu.dot_dimension_numbers<[1], [1], [0], [0], [0, 0, 1, 0], [], []>} : vector<8x8xf32>, vector<8x8xf32>, vector<8x8xf32> -> vector<8x8xf32>
    %cst_20 = arith.constant dense<0xFF800000> : vector<8xf32>
    %53 = vector.multi_reduction <maximumf>, %52, %cst_20 [1] : vector<8x8xf32> to vector<8xf32>
    %54 = vector.shape_cast %53 : vector<8xf32> to vector<8x1xf32>
    %55 = vector.broadcast %54 : vector<8x1xf32> to vector<8x8xf32>
    %56 = arith.subf %52, %55 : vector<8x8xf32>
    %57 = math.exp %56 : vector<8x8xf32>
    %cst_21 = arith.constant dense<0.000000e+00> : vector<8xf32>
    %58 = vector.multi_reduction <add>, %57, %cst_21 [1] : vector<8x8xf32> to vector<8xf32>
    %59 = vector.shape_cast %58 : vector<8xf32> to vector<8x1xf32>
    %60 = tpu.reciprocal %59 {approx = true} : vector<8x1xf32> -> vector<8x1xf32>
    %61 = arith.mulf %59, %60 : vector<8x1xf32>
    %cst_22 = arith.constant 2.000000e+00 : f32
    %62 = vector.broadcast %cst_22 : f32 to vector<8x1xf32>
    %63 = arith.subf %62, %61 : vector<8x1xf32>
    %64 = arith.mulf %60, %63 : vector<8x1xf32>
    %65 = vector.broadcast %64 : vector<8x1xf32> to vector<8x8xf32>
    %66 = arith.mulf %57, %65 : vector<8x8xf32>
    %67 = arith.addf %46, %66 : vector<8x8xf32>
    %cst_23 = arith.constant dense<0.000000e+00> : vector<8x8xf32>
    %68 = tpu.matmul %66, %51, %cst_23 {dimension_numbers = #tpu.dot_dimension_numbers<[1], [0], [0], [1], [0, 0, 1, 1], [], []>} : vector<8x8xf32>, vector<8x8xf32>, vector<8x8xf32> -> vector<8x8xf32>
    %c0_24 = arith.constant 0 : index
    %c16 = arith.constant 16 : index
    %69 = vector.load %arg7[%c0_24, %c16] : memref<16x32xf32, #tpu.memory_space<vmem>>, vector<8x8xf32>
    tpu.vector_store %arg7[%c0_24, %c16], %68 {strides = array<i32>} : memref<16x32xf32, #tpu.memory_space<vmem>>, vector<8x8xf32>,
    %70 = vector.extract_strided_slice %5 {offsets = [0, 72], sizes = [8, 8], strides = [1, 1]} : vector<16x96xf32> to vector<8x8xf32>
    %71 = vector.extract_strided_slice %5 {offsets = [0, 80], sizes = [8, 8], strides = [1, 1]} : vector<16x96xf32> to vector<8x8xf32>
    %72 = vector.extract_strided_slice %5 {offsets = [0, 88], sizes = [8, 8], strides = [1, 1]} : vector<16x96xf32> to vector<8x8xf32>
    %cst_25 = arith.constant dense<0.000000e+00> : vector<8x8xf32>
    %73 = tpu.matmul %70, %71, %cst_25 {dimension_numbers = #tpu.dot_dimension_numbers<[1], [1], [0], [0], [0, 0, 1, 0], [], []>} : vector<8x8xf32>, vector<8x8xf32>, vector<8x8xf32> -> vector<8x8xf32>
    %cst_26 = arith.constant dense<0xFF800000> : vector<8xf32>
    %74 = vector.multi_reduction <maximumf>, %73, %cst_26 [1] : vector<8x8xf32> to vector<8xf32>
    %75 = vector.shape_cast %74 : vector<8xf32> to vector<8x1xf32>
    %76 = vector.broadcast %75 : vector<8x1xf32> to vector<8x8xf32>
    %77 = arith.subf %73, %76 : vector<8x8xf32>
    %78 = math.exp %77 : vector<8x8xf32>
    %cst_27 = arith.constant dense<0.000000e+00> : vector<8xf32>
    %79 = vector.multi_reduction <add>, %78, %cst_27 [1] : vector<8x8xf32> to vector<8xf32>
    %80 = vector.shape_cast %79 : vector<8xf32> to vector<8x1xf32>
    %81 = tpu.reciprocal %80 {approx = true} : vector<8x1xf32> -> vector<8x1xf32>
    %82 = arith.mulf %80, %81 : vector<8x1xf32>
    %cst_28 = arith.constant 2.000000e+00 : f32
    %83 = vector.broadcast %cst_28 : f32 to vector<8x1xf32>
    %84 = arith.subf %83, %82 : vector<8x1xf32>
    %85 = arith.mulf %81, %84 : vector<8x1xf32>
    %86 = vector.broadcast %85 : vector<8x1xf32> to vector<8x8xf32>
    %87 = arith.mulf %78, %86 : vector<8x8xf32>
    %88 = arith.addf %67, %87 : vector<8x8xf32>
    %cst_29 = arith.constant dense<0.000000e+00> : vector<8x8xf32>
    %89 = tpu.matmul %87, %72, %cst_29 {dimension_numbers = #tpu.dot_dimension_numbers<[1], [0], [0], [1], [0, 0, 1, 1], [], []>} : vector<8x8xf32>, vector<8x8xf32>, vector<8x8xf32> -> vector<8x8xf32>
    %c0_30 = arith.constant 0 : index
    %c24 = arith.constant 24 : index
    %90 = vector.load %arg7[%c0_30, %c24] : memref<16x32xf32, #tpu.memory_space<vmem>>, vector<8x8xf32>
    tpu.vector_store %arg7[%c0_30, %c24], %89 {strides = array<i32>} : memref<16x32xf32, #tpu.memory_space<vmem>>, vector<8x8xf32>,
    %cst_31 = arith.constant 2.500000e-01 : f32
    %91 = vector.broadcast %cst_31 : f32 to vector<8x8xf32>
    %92 = arith.mulf %88, %91 : vector<8x8xf32>
    %c0_32 = arith.constant 0 : index
    %c0_33 = arith.constant 0 : index
    %93 = vector.load %arg6[%c0_32, %c0_33] : memref<16x8xf32, #tpu.memory_space<vmem>>, vector<8x8xf32>
    tpu.vector_store %arg6[%c0_32, %c0_33], %92 {strides = array<i32>} : memref<16x8xf32, #tpu.memory_space<vmem>>, vector<8x8xf32>,
    %cst_34 = arith.constant 0.000000e+00 : f32
    %94 = vector.broadcast %cst_34 : f32 to vector<8x8xf32>
    %95 = vector.extract_strided_slice %5 {offsets = [8, 0], sizes = [8, 8], strides = [1, 1]} : vector<16x96xf32> to vector<8x8xf32>
    %96 = vector.extract_strided_slice %5 {offsets = [8, 8], sizes = [8, 8], strides = [1, 1]} : vector<16x96xf32> to vector<8x8xf32>
    %97 = vector.extract_strided_slice %5 {offsets = [8, 16], sizes = [8, 8], strides = [1, 1]} : vector<16x96xf32> to vector<8x8xf32>
    %cst_35 = arith.constant dense<0.000000e+00> : vector<8x8xf32>
    %98 = tpu.matmul %95, %96, %cst_35 {dimension_numbers = #tpu.dot_dimension_numbers<[1], [1], [0], [0], [0, 0, 1, 0], [], []>} : vector<8x8xf32>, vector<8x8xf32>, vector<8x8xf32> -> vector<8x8xf32>
    %cst_36 = arith.constant dense<0xFF800000> : vector<8xf32>
    %99 = vector.multi_reduction <maximumf>, %98, %cst_36 [1] : vector<8x8xf32> to vector<8xf32>
    %100 = vector.shape_cast %99 : vector<8xf32> to vector<8x1xf32>
    %101 = vector.broadcast %100 : vector<8x1xf32> to vector<8x8xf32>
    %102 = arith.subf %98, %101 : vector<8x8xf32>
    %103 = math.exp %102 : vector<8x8xf32>
    %cst_37 = arith.constant dense<0.000000e+00> : vector<8xf32>
    %104 = vector.multi_reduction <add>, %103, %cst_37 [1] : vector<8x8xf32> to vector<8xf32>
    %105 = vector.shape_cast %104 : vector<8xf32> to vector<8x1xf32>
    %106 = tpu.reciprocal %105 {approx = true} : vector<8x1xf32> -> vector<8x1xf32>
    %107 = arith.mulf %105, %106 : vector<8x1xf32>
    %cst_38 = arith.constant 2.000000e+00 : f32
    %108 = vector.broadcast %cst_38 : f32 to vector<8x1xf32>
    %109 = arith.subf %108, %107 : vector<8x1xf32>
    %110 = arith.mulf %106, %109 : vector<8x1xf32>
    %111 = vector.broadcast %110 : vector<8x1xf32> to vector<8x8xf32>
    %112 = arith.mulf %103, %111 : vector<8x8xf32>
    %113 = arith.addf %94, %112 : vector<8x8xf32>
    %cst_39 = arith.constant dense<0.000000e+00> : vector<8x8xf32>
    %114 = tpu.matmul %112, %97, %cst_39 {dimension_numbers = #tpu.dot_dimension_numbers<[1], [0], [0], [1], [0, 0, 1, 1], [], []>} : vector<8x8xf32>, vector<8x8xf32>, vector<8x8xf32> -> vector<8x8xf32>
    %c8_40 = arith.constant 8 : index
    %c0_41 = arith.constant 0 : index
    %115 = vector.load %arg7[%c8_40, %c0_41] : memref<16x32xf32, #tpu.memory_space<vmem>>, vector<8x8xf32>
    tpu.vector_store %arg7[%c8_40, %c0_41], %114 {strides = array<i32>} : memref<16x32xf32, #tpu.memory_space<vmem>>, vector<8x8xf32>,
    %116 = vector.extract_strided_slice %5 {offsets = [8, 24], sizes = [8, 8], strides = [1, 1]} : vector<16x96xf32> to vector<8x8xf32>
    %117 = vector.extract_strided_slice %5 {offsets = [8, 32], sizes = [8, 8], strides = [1, 1]} : vector<16x96xf32> to vector<8x8xf32>
    %118 = vector.extract_strided_slice %5 {offsets = [8, 40], sizes = [8, 8], strides = [1, 1]} : vector<16x96xf32> to vector<8x8xf32>
    %cst_42 = arith.constant dense<0.000000e+00> : vector<8x8xf32>
    %119 = tpu.matmul %116, %117, %cst_42 {dimension_numbers = #tpu.dot_dimension_numbers<[1], [1], [0], [0], [0, 0, 1, 0], [], []>} : vector<8x8xf32>, vector<8x8xf32>, vector<8x8xf32> -> vector<8x8xf32>
    %cst_43 = arith.constant dense<0xFF800000> : vector<8xf32>
    %120 = vector.multi_reduction <maximumf>, %119, %cst_43 [1] : vector<8x8xf32> to vector<8xf32>
    %121 = vector.shape_cast %120 : vector<8xf32> to vector<8x1xf32>
    %122 = vector.broadcast %121 : vector<8x1xf32> to vector<8x8xf32>
    %123 = arith.subf %119, %122 : vector<8x8xf32>
    %124 = math.exp %123 : vector<8x8xf32>
    %cst_44 = arith.constant dense<0.000000e+00> : vector<8xf32>
    %125 = vector.multi_reduction <add>, %124, %cst_44 [1] : vector<8x8xf32> to vector<8xf32>
    %126 = vector.shape_cast %125 : vector<8xf32> to vector<8x1xf32>
    %127 = tpu.reciprocal %126 {approx = true} : vector<8x1xf32> -> vector<8x1xf32>
    %128 = arith.mulf %126, %127 : vector<8x1xf32>
    %cst_45 = arith.constant 2.000000e+00 : f32
    %129 = vector.broadcast %cst_45 : f32 to vector<8x1xf32>
    %130 = arith.subf %129, %128 : vector<8x1xf32>
    %131 = arith.mulf %127, %130 : vector<8x1xf32>
    %132 = vector.broadcast %131 : vector<8x1xf32> to vector<8x8xf32>
    %133 = arith.mulf %124, %132 : vector<8x8xf32>
    %134 = arith.addf %113, %133 : vector<8x8xf32>
    %cst_46 = arith.constant dense<0.000000e+00> : vector<8x8xf32>
    %135 = tpu.matmul %133, %118, %cst_46 {dimension_numbers = #tpu.dot_dimension_numbers<[1], [0], [0], [1], [0, 0, 1, 1], [], []>} : vector<8x8xf32>, vector<8x8xf32>, vector<8x8xf32> -> vector<8x8xf32>
    %c8_47 = arith.constant 8 : index
    %c8_48 = arith.constant 8 : index
    %136 = vector.load %arg7[%c8_47, %c8_48] : memref<16x32xf32, #tpu.memory_space<vmem>>, vector<8x8xf32>
    tpu.vector_store %arg7[%c8_47, %c8_48], %135 {strides = array<i32>} : memref<16x32xf32, #tpu.memory_space<vmem>>, vector<8x8xf32>,
    %137 = vector.extract_strided_slice %5 {offsets = [8, 48], sizes = [8, 8], strides = [1, 1]} : vector<16x96xf32> to vector<8x8xf32>
    %138 = vector.extract_strided_slice %5 {offsets = [8, 56], sizes = [8, 8], strides = [1, 1]} : vector<16x96xf32> to vector<8x8xf32>
    %139 = vector.extract_strided_slice %5 {offsets = [8, 64], sizes = [8, 8], strides = [1, 1]} : vector<16x96xf32> to vector<8x8xf32>
    %cst_49 = arith.constant dense<0.000000e+00> : vector<8x8xf32>
    %140 = tpu.matmul %137, %138, %cst_49 {dimension_numbers = #tpu.dot_dimension_numbers<[1], [1], [0], [0], [0, 0, 1, 0], [], []>} : vector<8x8xf32>, vector<8x8xf32>, vector<8x8xf32> -> vector<8x8xf32>
    %cst_50 = arith.constant dense<0xFF800000> : vector<8xf32>
    %141 = vector.multi_reduction <maximumf>, %140, %cst_50 [1] : vector<8x8xf32> to vector<8xf32>
    %142 = vector.shape_cast %141 : vector<8xf32> to vector<8x1xf32>
    %143 = vector.broadcast %142 : vector<8x1xf32> to vector<8x8xf32>
    %144 = arith.subf %140, %143 : vector<8x8xf32>
    %145 = math.exp %144 : vector<8x8xf32>
    %cst_51 = arith.constant dense<0.000000e+00> : vector<8xf32>
    %146 = vector.multi_reduction <add>, %145, %cst_51 [1] : vector<8x8xf32> to vector<8xf32>
    %147 = vector.shape_cast %146 : vector<8xf32> to vector<8x1xf32>
    %148 = tpu.reciprocal %147 {approx = true} : vector<8x1xf32> -> vector<8x1xf32>
    %149 = arith.mulf %147, %148 : vector<8x1xf32>
    %cst_52 = arith.constant 2.000000e+00 : f32
    %150 = vector.broadcast %cst_52 : f32 to vector<8x1xf32>
    %151 = arith.subf %150, %149 : vector<8x1xf32>
    %152 = arith.mulf %148, %151 : vector<8x1xf32>
    %153 = vector.broadcast %152 : vector<8x1xf32> to vector<8x8xf32>
    %154 = arith.mulf %145, %153 : vector<8x8xf32>
    %155 = arith.addf %134, %154 : vector<8x8xf32>
    %cst_53 = arith.constant dense<0.000000e+00> : vector<8x8xf32>
    %156 = tpu.matmul %154, %139, %cst_53 {dimension_numbers = #tpu.dot_dimension_numbers<[1], [0], [0], [1], [0, 0, 1, 1], [], []>} : vector<8x8xf32>, vector<8x8xf32>, vector<8x8xf32> -> vector<8x8xf32>
    %c8_54 = arith.constant 8 : index
    %c16_55 = arith.constant 16 : index
    %157 = vector.load %arg7[%c8_54, %c16_55] : memref<16x32xf32, #tpu.memory_space<vmem>>, vector<8x8xf32>
    tpu.vector_store %arg7[%c8_54, %c16_55], %156 {strides = array<i32>} : memref<16x32xf32, #tpu.memory_space<vmem>>, vector<8x8xf32>,
    %158 = vector.extract_strided_slice %5 {offsets = [8, 72], sizes = [8, 8], strides = [1, 1]} : vector<16x96xf32> to vector<8x8xf32>
    %159 = vector.extract_strided_slice %5 {offsets = [8, 80], sizes = [8, 8], strides = [1, 1]} : vector<16x96xf32> to vector<8x8xf32>
    %160 = vector.extract_strided_slice %5 {offsets = [8, 88], sizes = [8, 8], strides = [1, 1]} : vector<16x96xf32> to vector<8x8xf32>
    %cst_56 = arith.constant dense<0.000000e+00> : vector<8x8xf32>
    %161 = tpu.matmul %158, %159, %cst_56 {dimension_numbers = #tpu.dot_dimension_numbers<[1], [1], [0], [0], [0, 0, 1, 0], [], []>} : vector<8x8xf32>, vector<8x8xf32>, vector<8x8xf32> -> vector<8x8xf32>
    %cst_57 = arith.constant dense<0xFF800000> : vector<8xf32>
    %162 = vector.multi_reduction <maximumf>, %161, %cst_57 [1] : vector<8x8xf32> to vector<8xf32>
    %163 = vector.shape_cast %162 : vector<8xf32> to vector<8x1xf32>
    %164 = vector.broadcast %163 : vector<8x1xf32> to vector<8x8xf32>
    %165 = arith.subf %161, %164 : vector<8x8xf32>
    %166 = math.exp %165 : vector<8x8xf32>
    %cst_58 = arith.constant dense<0.000000e+00> : vector<8xf32>
    %167 = vector.multi_reduction <add>, %166, %cst_58 [1] : vector<8x8xf32> to vector<8xf32>
    %168 = vector.shape_cast %167 : vector<8xf32> to vector<8x1xf32>
    %169 = tpu.reciprocal %168 {approx = true} : vector<8x1xf32> -> vector<8x1xf32>
    %170 = arith.mulf %168, %169 : vector<8x1xf32>
    %cst_59 = arith.constant 2.000000e+00 : f32
    %171 = vector.broadcast %cst_59 : f32 to vector<8x1xf32>
    %172 = arith.subf %171, %170 : vector<8x1xf32>
    %173 = arith.mulf %169, %172 : vector<8x1xf32>
    %174 = vector.broadcast %173 : vector<8x1xf32> to vector<8x8xf32>
    %175 = arith.mulf %166, %174 : vector<8x8xf32>
    %176 = arith.addf %155, %175 : vector<8x8xf32>
    %cst_60 = arith.constant dense<0.000000e+00> : vector<8x8xf32>
    %177 = tpu.matmul %175, %160, %cst_60 {dimension_numbers = #tpu.dot_dimension_numbers<[1], [0], [0], [1], [0, 0, 1, 1], [], []>} : vector<8x8xf32>, vector<8x8xf32>, vector<8x8xf32> -> vector<8x8xf32>
    %c8_61 = arith.constant 8 : index
    %c24_62 = arith.constant 24 : index
    %178 = vector.load %arg7[%c8_61, %c24_62] : memref<16x32xf32, #tpu.memory_space<vmem>>, vector<8x8xf32>
    tpu.vector_store %arg7[%c8_61, %c24_62], %177 {strides = array<i32>} : memref<16x32xf32, #tpu.memory_space<vmem>>, vector<8x8xf32>,
    %cst_63 = arith.constant 2.500000e-01 : f32
    %179 = vector.broadcast %cst_63 : f32 to vector<8x8xf32>
    %180 = arith.mulf %176, %179 : vector<8x8xf32>
    %c8_64 = arith.constant 8 : index
    %c0_65 = arith.constant 0 : index
    %181 = vector.load %arg6[%c8_64, %c0_65] : memref<16x8xf32, #tpu.memory_space<vmem>>, vector<8x8xf32>
    tpu.vector_store %arg6[%c8_64, %c0_65], %180 {strides = array<i32>} : memref<16x8xf32, #tpu.memory_space<vmem>>, vector<8x8xf32>,
    %c0_66 = arith.constant 0 : index
    %c0_67 = arith.constant 0 : index
    %182 = vector.load %arg7[%c0_66, %c0_67] : memref<16x32xf32, #tpu.memory_space<vmem>>, vector<16x32xf32>
    %c0_68 = arith.constant 0 : index
    %c0_69 = arith.constant 0 : index
    %183 = vector.load %arg3[%c0_68, %c0_69] : memref<32x32xf32, #tpu.memory_space<vmem>>, vector<32x32xf32>
    %cst_70 = arith.constant dense<0.000000e+00> : vector<16x32xf32>
    %184 = tpu.matmul %182, %183, %cst_70 {dimension_numbers = #tpu.dot_dimension_numbers<[1], [0], [0], [1], [0, 0, 1, 1], [], []>} : vector<16x32xf32>, vector<32x32xf32>, vector<16x32xf32> -> vector<16x32xf32>
    %c0_71 = arith.constant 0 : index
    %c0_72 = arith.constant 0 : index
    %185 = vector.load %arg4[%c0_71, %c0_72] : memref<1x32xf32, #tpu.memory_space<vmem>>, vector<1x32xf32>
    %186 = vector.broadcast %185 : vector<1x32xf32> to vector<16x32xf32>
    %187 = arith.addf %184, %186 : vector<16x32xf32>
    %c0_73 = arith.constant 0 : index
    %c0_74 = arith.constant 0 : index
    %188 = vector.load %arg5[%c0_73, %c0_74] : memref<16x32xf32, #tpu.memory_space<vmem>>, vector<16x32xf32>
    tpu.vector_store %arg5[%c0_73, %c0_74], %187 {strides = array<i32>} : memref<16x32xf32, #tpu.memory_space<vmem>>, vector<16x32xf32>,
    return
  }
}

</mosaic_0001>

<llo_original>
// kernel: mha_forward.1
$region0: #{mha_forward.1}
  #allocation0 [shape = 'u32[]', space=smem, size = 0x4, offset = 0x4, fixed_abs, tag = 'smem constant byte address 0x4 - core index']
  #allocation1 [shape = 'u32[144,128]{1,0:T(1,128)}', space=vmem, size = 0x12000, scoped, tag = 'internal scratch']
  #allocation2 [shape = 'f32[16,32]{1,0:T(8,128)}', space=vmem, size = 0x2000, scoped, tag = 'scratch operand']
  %s0 = inlined_call_operand.hbm [shape: f32[16,32], index: 0, kind: input, shape index: {}]
  %s1 = inlined_call_operand.hbm [shape: f32[32,96], index: 1, kind: input, shape index: {}]
  %s2 = inlined_call_operand.vmem [shape: f32[1,96], index: 2, kind: input, shape index: {}]
  %s3 = inlined_call_operand.hbm [shape: f32[32,32], index: 3, kind: input, shape index: {}]
  %s4 = inlined_call_operand.vmem [shape: f32[1,32], index: 4, kind: input, shape index: {}]
  %s5 = inlined_call_operand.hbm [shape: f32[16,32], index: 5, kind: output, shape index: {0}]
  %s6 = inlined_call_operand.hbm [shape: f32[16,8], index: 6, kind: output, shape index: {1}]
  %7 = xla_tuple %s5, %s6
  %s8 = sld [smem:[#allocation0]]
  $region50: #{mha_forward.1} parent=0
    _
  %s10 = ssub.s32 1, %s8
  %s11 = scalar_select 0, %s10, %s8
  $region1: #{mha_forward.1} parent=0
    #allocation3 [shape = 'u8[8192]{0}', space=vmem, size = 0x2000, scoped, tag = 'input window, operand 0, single buffered']
    #allocation4 [shape = 's32[1]{0}', space=sflag, size = 0x4, scoped, tag = 'scoped memory for mha_forward.1']
    #allocation5 [shape = 's32[1]{0}', space=sflag, size = 0x4, scoped, tag = 'scoped memory for mha_forward.1']
    #allocation6 [shape = 'u8[16384]{0}', space=vmem, size = 0x4000, scoped, tag = 'input window, operand 1, single buffered']
    #allocation7 [shape = 's32[1]{0}', space=sflag, size = 0x4, scoped, tag = 'scoped memory for mha_forward.1']
    #allocation8 [shape = 'u8[16384]{0}', space=vmem, size = 0x4000, scoped, tag = 'input window, operand 3, single buffered']
    #allocation9 [shape = 'u8[8192]{0}', space=vmem, size = 0x2000, scoped, tag = 'output window, operand 0, single buffered']
    #allocation10 [shape = 'u8[8192]{0}', space=vmem, size = 0x2000, scoped, tag = 'output window, operand 1, single buffered']
    #allocation11 [shape = 's32[1]{0}', space=sflag, size = 0x4, scoped, tag = 'scoped memory for mha_forward.1']
    %12 = vsyncpa [#allocation4], 0
    %13 = vsyncpa [#allocation7], 0
    %14 = vsyncpa [#allocation5], 0
    %15 = vsyncpa [#allocation11], 0
    // Predicated region
    $region2: #{mha_forward.1} parent=1 // pred_check
      _
    $region3: #{mha_forward.1} parent=1 // pred_check_branch
      %17 = sbr.rel (0) target = $region5
    $region4: #{mha_forward.1} parent=1 // pred_region
      %s19 = ssub.s32 256, 256
      %20 = vsyncadd [#allocation4], %s19
      %s21 = sshll.u32 [#allocation3], 4
      %s22 = int_to_ptr.vmem [resolvable:$true] %s21
      %27 = dma.hbm_to_vmem [thread:$0]  %s0, 256, %s22, [#allocation4], 128, 128, 8
    $region5: #{mha_forward.1} parent=1 // pred_fallthru
      _
    // Predicated region
    $region6: #{mha_forward.1} parent=1 // pred_check
      _
    $region7: #{mha_forward.1} parent=1 // pred_check_branch
      %29 = sbr.rel (0) target = $region9
    $region8: #{mha_forward.1} parent=1 // pred_region
      %s31 = ssub.s32 512, 512
      %32 = vsyncadd [#allocation7], %s31
      %s33 = sshll.u32 [#allocation6], 4
      %s34 = int_to_ptr.vmem [resolvable:$true] %s33
      %39 = dma.hbm_to_vmem [thread:$0]  %s1, 512, %s34, [#allocation7], 128, 128, 8
    $region9: #{mha_forward.1} parent=1 // pred_fallthru
      _
    // Predicated region
    $region10: #{mha_forward.1} parent=1 // pred_check
      _
    $region11: #{mha_forward.1} parent=1 // pred_check_branch
      %41 = sbr.rel (0) target = $region13
    $region12: #{mha_forward.1} parent=1 // pred_region
      _
    $region13: #{mha_forward.1} parent=1 // pred_fallthru
      _
    // Predicated region
    $region14: #{mha_forward.1} parent=1 // pred_check
      _
    $region15: #{mha_forward.1} parent=1 // pred_check_branch
      %43 = sbr.rel (0) target = $region17
    $region16: #{mha_forward.1} parent=1 // pred_region
      %s45 = ssub.s32 512, 512
      %46 = vsyncadd [#allocation7], %s45
      %s47 = sshll.u32 [#allocation8], 4
      %s48 = int_to_ptr.vmem [resolvable:$true] %s47
      %53 = dma.hbm_to_vmem [thread:$0]  %s3, 512, %s48, [#allocation7], 128, 128, 8
    $region17: #{mha_forward.1} parent=1 // pred_fallthru
      _
    // Predicated region
    $region18: #{mha_forward.1} parent=1 // pred_check
      _
    $region19: #{mha_forward.1} parent=1 // pred_check_branch
      %55 = sbr.rel (0) target = $region21
    $region20: #{mha_forward.1} parent=1 // pred_region
      _
    $region21: #{mha_forward.1} parent=1 // pred_fallthru
      _
    // Predicated region
    $region22: #{mha_forward.1} parent=1 // pred_check
      _
    $region23: #{mha_forward.1} parent=1 // pred_check_branch
      %57 = sbr.rel (0) target = $region25
    $region24: #{mha_forward.1} parent=1 // pred_region
      %58 = dma.done [#allocation4], 256
    $region25: #{mha_forward.1} parent=1 // pred_fallthru
      _
    // Predicated region
    $region26: #{mha_forward.1} parent=1 // pred_check
      _
    $region27: #{mha_forward.1} parent=1 // pred_check_branch
      %60 = sbr.rel (0) target = $region29
    $region28: #{mha_forward.1} parent=1 // pred_region
      %61 = dma.done [#allocation7], 512
    $region29: #{mha_forward.1} parent=1 // pred_fallthru
      _
    // Predicated region
    $region30: #{mha_forward.1} parent=1 // pred_check
      _
    $region31: #{mha_forward.1} parent=1 // pred_check_branch
      %63 = sbr.rel (0) target = $region33
    $region32: #{mha_forward.1} parent=1 // pred_region
      %64 = dma.done [#allocation7], 512
    $region33: #{mha_forward.1} parent=1 // pred_fallthru
      _
    %v65 = vld [vmem:[#allocation3] sm:$0xff]
    %v66 = vld [vmem:[#allocation3 + $0x8] sm:$0xff]
    %v67 = vld [vmem:[#allocation6] sm:$0xff]
    %v68 = vld [vmem:[#allocation6 + $0x8] sm:$0xff]
    %v69 = vld [vmem:[#allocation6 + $0x10] sm:$0xff]
    %v70 = vld [vmem:[#allocation6 + $0x18] sm:$0xff]
    %v71 = vld [vmem:[%s2] sm:$0x1]
    %v73 = vlaneseq
    %v74 = vshrl.u32 %v73, 7
    %v75 = vsub.s32 0, %v74
    %v76 = vrot.slane %v71, %v75
    %vm78 = vcmask 261120
    %v80 = vsel %vm78, %v65, 0
    %v83 = vsel %vm78, %v66, 0
    %85 = vmatprep.subr.mxu0 0.0
    %86 = vmatpush1.msra.mxu0 %v67
    %87 = vmatprep.subr.mxu0 0.0
    %88 = vmatpush1.msra.mxu0 %v68
    %89 = vmatprep.subr.mxu0 0.0
    %90 = vmatpush1.msra.mxu0 %v69
    %91 = vmatprep.subr.mxu0 0.0
    %92 = vmatpush1.msra.mxu0 %v70
    %93 = vmatprep.subr.mxu0 0.0
    %94 = vmatpush1.msra.mxu0 0.0
    %95 = vmatprep.subr.mxu0 0.0
    %96 = vmatpush1.msra.mxu0 0.0
    %97 = vmatprep.subr.mxu0 0.0
    %98 = vmatpush1.msra.mxu0 0.0
    %99 = vmatprep.subr.mxu0 0.0
    %100 = vmatpush1.msra.mxu0 0.0
    %101 = vmatprep.subr.mxu0 0.0
    %102 = vmatpush1.msra.mxu0 0.0
    %103 = vmatprep.subr.mxu0 0.0
    %104 = vmatpush1.msra.mxu0 0.0
    %105 = vmatprep.subr.mxu0 0.0
    %106 = vmatpush1.msra.mxu0 0.0
    %107 = vmatprep.subr.mxu0 0.0
    %108 = vmatpush1.msra.mxu0 0.0
    %109 = vmatprep.subr.mxu0 0.0
    %110 = vmatpush1.msra.mxu0 0.0
    %111 = vmatprep.subr.mxu0 0.0
    %112 = vmatpush1.msra.mxu0 0.0
    %113 = vmatprep.subr.mxu0 0.0
    %114 = vmatpush1.msra.mxu0 0.0
    %115 = vmatprep.subr.mxu0 0.0
    %116 = vmatpush1.msra.mxu0 0.0
    %117 = vmatprep.subr.mxu0 0.0
    %118 = vmatpush1.msra.mxu0 0.0
    %119 = vmatprep.subr.mxu0 0.0
    %120 = vmatpush1.msra.mxu0 0.0
    %121 = vmatprep.subr.mxu0 0.0
    %122 = vmatpush1.msra.mxu0 0.0
    %123 = vmatprep.subr.mxu0 0.0
    %124 = vmatpush1.msra.mxu0 0.0
    %125 = vmatprep.subr.mxu0 0.0
    %126 = vmatpush1.msra.mxu0 0.0
    %127 = vmatprep.subr.mxu0 0.0
    %128 = vmatpush1.msra.mxu0 0.0
    %129 = vmatprep.subr.mxu0 0.0
    %130 = vmatpush1.msra.mxu0 0.0
    %131 = vmatprep.subr.mxu0 0.0
    %132 = vmatpush1.msra.mxu0 0.0
    %133 = vmatprep.subr.mxu0 0.0
    %134 = vmatpush1.msra.mxu0 0.0
    %135 = vmatprep.subr.mxu0 0.0
    %136 = vmatpush1.msra.mxu0 0.0
    %137 = vmatprep.subr.mxu0 0.0
    %138 = vmatpush1.msra.mxu0 0.0
    %139 = vmatprep.subr.mxu0 0.0
    %140 = vmatpush1.msra.mxu0 0.0
    %141 = vmatprep.subr.mxu0 0.0
    %142 = vmatpush1.msra.mxu0 0.0
    %143 = vmatprep.subr.mxu0 0.0
    %144 = vmatpush1.msra.mxu0 0.0
    %145 = vmatprep.subr.mxu0 0.0
    %146 = vmatpush1.msra.mxu0 0.0
    %147 = vmatprep.subr.mxu0 0.0
    %148 = vmatpush1.msra.mxu0 0.0
    %149 = vmatprep.mubr.f32.mxu0 0.0
    %150 = vmatmul.mubr.f32.gmra.mrb[0].mxu0 %v80
    %v151 = vpop.f32.mrb[0].mxu0
    %v152 = vadd.f32 %v76, %v151
    %v153 = vpop.f32.mrb[0].mxu0
    %154 = vmatprep.mubr.f32.mxu0 0.0
    %155 = vmatmul.mubr.f32.gmra.mrb[0].mxu0 %v83
    %v156 = vpop.f32.mrb[0].mxu0
    %v157 = vadd.f32 %v76, %v156
    %v158 = vpop.f32.mrb[0].mxu0
    %159 = vdwg.mxu0
    %161 = vrot.lane.b32.xlu0 %v152, 120
    %v162 = vpop.permute.xlu0 %161
    %vm163 = vcmask 64512
    %v164 = vsel %vm163, %v152, 0
    %v166 = vsel %vm163, %v162, 0
    %168 = vmatprep.subr.mxu0 0.0
    %169 = vmatpush1.xpose.msra.mxu0 %v166
    %170 = vmatprep.subr.mxu0 0.0
    %171 = vmatpush1.xpose.msra.mxu0 0.0
    %172 = vmatprep.subr.mxu0 0.0
    %173 = vmatpush1.xpose.msra.mxu0 0.0
    %174 = vmatprep.subr.mxu0 0.0
    %175 = vmatpush1.xpose.msra.mxu0 0.0
    %176 = vmatprep.subr.mxu0 0.0
    %177 = vmatpush1.xpose.msra.mxu0 0.0
    %178 = vmatprep.subr.mxu0 0.0
    %179 = vmatpush1.xpose.msra.mxu0 0.0
    %180 = vmatprep.subr.mxu0 0.0
    %181 = vmatpush1.xpose.msra.mxu0 0.0
    %182 = vmatprep.subr.mxu0 0.0
    %183 = vmatpush1.xpose.msra.mxu0 0.0
    %184 = vmatprep.subr.mxu0 0.0
    %185 = vmatpush1.xpose.msra.mxu0 0.0
    %186 = vmatprep.subr.mxu0 0.0
    %187 = vmatpush1.xpose.msra.mxu0 0.0
    %188 = vmatprep.subr.mxu0 0.0
    %189 = vmatpush1.xpose.msra.mxu0 0.0
    %190 = vmatprep.subr.mxu0 0.0
    %191 = vmatpush1.xpose.msra.mxu0 0.0
    %192 = vmatprep.subr.mxu0 0.0
    %193 = vmatpush1.xpose.msra.mxu0 0.0
    %194 = vmatprep.subr.mxu0 0.0
    %195 = vmatpush1.xpose.msra.mxu0 0.0
    %196 = vmatprep.subr.mxu0 0.0
    %197 = vmatpush1.xpose.msra.mxu0 0.0
    %198 = vmatprep.subr.mxu0 0.0
    %199 = vmatpush1.xpose.msra.mxu0 0.0
    %200 = vmatprep.subr.mxu0 0.0
    %201 = vmatpush1.xpose.msra.mxu0 0.0
    %202 = vmatprep.subr.mxu0 0.0
    %203 = vmatpush1.xpose.msra.mxu0 0.0
    %204 = vmatprep.subr.mxu0 0.0
    %205 = vmatpush1.xpose.msra.mxu0 0.0
    %206 = vmatprep.subr.mxu0 0.0
    %207 = vmatpush1.xpose.msra.mxu0 0.0
    %208 = vmatprep.subr.mxu0 0.0
    %209 = vmatpush1.xpose.msra.mxu0 0.0
    %210 = vmatprep.subr.mxu0 0.0
    %211 = vmatpush1.xpose.msra.mxu0 0.0
    %212 = vmatprep.subr.mxu0 0.0
    %213 = vmatpush1.xpose.msra.mxu0 0.0
    %214 = vmatprep.subr.mxu0 0.0
    %215 = vmatpush1.xpose.msra.mxu0 0.0
    %216 = vmatprep.subr.mxu0 0.0
    %217 = vmatpush1.xpose.msra.mxu0 0.0
    %218 = vmatprep.subr.mxu0 0.0
    %219 = vmatpush1.xpose.msra.mxu0 0.0
    %220 = vmatprep.subr.mxu0 0.0
    %221 = vmatpush1.xpose.msra.mxu0 0.0
    %222 = vmatprep.subr.mxu0 0.0
    %223 = vmatpush1.xpose.msra.mxu0 0.0
    %224 = vmatprep.subr.mxu0 0.0
    %225 = vmatpush1.xpose.msra.mxu0 0.0
    %226 = vmatprep.subr.mxu0 0.0
    %227 = vmatpush1.xpose.msra.mxu0 0.0
    %228 = vmatprep.subr.mxu0 0.0
    %229 = vmatpush1.xpose.msra.mxu0 0.0
    %230 = vmatprep.subr.mxu0 0.0
    %231 = vmatpush1.xpose.msra.mxu0 0.0
    %232 = vmatprep.mubr.f32.mxu0 0.0
    %233 = vmatmul.mubr.f32.gmra.mrb[0].mxu0 %v164
    %v234 = vpop.f32.mrb[0].mxu0
    %v235 = vadd.f32 0.0, %v234
    %v236 = vpop.f32.mrb[0].mxu0
    %237 = vdwg.mxu0
    %v238 = vsel %vm163, %v235, -inf
    %239 = vmax.xlane.f32.xlu0 %v238
    %v240 = vpop.xlane.xlu0 %239
    %v241 = vsub.f32 %v235, %v240
    %v242 = vmul.f32 %v241, 1.442695
    %v243 = vpow.pop %v242
    %v244 = vsel %vm163, %v243, 0.0
    %245 = vadd.xlane.f32.xlu0 %v244
    %v246 = vpop.xlane.xlu0 %245
    %v247 = vrcp.pop %v246
    %v248 = vmul.f32 %v246, %v247
    %v249 = vsub.f32 2.0, %v248
    %v250 = vmul.f32 %v247, %v249
    %v251 = vmul.f32 %v243, %v250
    %v252 = vadd.f32 %v251, 0.0
    %253 = vrot.lane.b32.xlu0 %v152, 112
    %v254 = vpop.permute.xlu0 %253
    %v257 = vsel %vm163, %v251, 0
    %259 = vmatprep.subr.mxu0 0.0
    %260 = vmatpush1.msra.mxu0 %v254
    %261 = vmatprep.subr.mxu0 0.0
    %262 = vmatpush1.msra.mxu0 0.0
    %263 = vmatprep.subr.mxu0 0.0
    %264 = vmatpush1.msra.mxu0 0.0
    %265 = vmatprep.subr.mxu0 0.0
    %266 = vmatpush1.msra.mxu0 0.0
    %267 = vmatprep.subr.mxu0 0.0
    %268 = vmatpush1.msra.mxu0 0.0
    %269 = vmatprep.subr.mxu0 0.0
    %270 = vmatpush1.msra.mxu0 0.0
    %271 = vmatprep.subr.mxu0 0.0
    %272 = vmatpush1.msra.mxu0 0.0
    %273 = vmatprep.subr.mxu0 0.0
    %274 = vmatpush1.msra.mxu0 0.0
    %275 = vmatprep.subr.mxu0 0.0
    %276 = vmatpush1.msra.mxu0 0.0
    %277 = vmatprep.subr.mxu0 0.0
    %278 = vmatpush1.msra.mxu0 0.0
    %279 = vmatprep.subr.mxu0 0.0
    %280 = vmatpush1.msra.mxu0 0.0
    %281 = vmatprep.subr.mxu0 0.0
    %282 = vmatpush1.msra.mxu0 0.0
    %283 = vmatprep.subr.mxu0 0.0
    %284 = vmatpush1.msra.mxu0 0.0
    %285 = vmatprep.subr.mxu0 0.0
    %286 = vmatpush1.msra.mxu0 0.0
    %287 = vmatprep.subr.mxu0 0.0
    %288 = vmatpush1.msra.mxu0 0.0
    %289 = vmatprep.subr.mxu0 0.0
    %290 = vmatpush1.msra.mxu0 0.0
    %291 = vmatprep.subr.mxu0 0.0
    %292 = vmatpush1.msra.mxu0 0.0
    %293 = vmatprep.subr.mxu0 0.0
    %294 = vmatpush1.msra.mxu0 0.0
    %295 = vmatprep.subr.mxu0 0.0
    %296 = vmatpush1.msra.mxu0 0.0
    %297 = vmatprep.subr.mxu0 0.0
    %298 = vmatpush1.msra.mxu0 0.0
    %299 = vmatprep.subr.mxu0 0.0
    %300 = vmatpush1.msra.mxu0 0.0
    %301 = vmatprep.subr.mxu0 0.0
    %302 = vmatpush1.msra.mxu0 0.0
    %303 = vmatprep.subr.mxu0 0.0
    %304 = vmatpush1.msra.mxu0 0.0
    %305 = vmatprep.subr.mxu0 0.0
    %306 = vmatpush1.msra.mxu0 0.0
    %307 = vmatprep.subr.mxu0 0.0
    %308 = vmatpush1.msra.mxu0 0.0
    %309 = vmatprep.subr.mxu0 0.0
    %310 = vmatpush1.msra.mxu0 0.0
    %311 = vmatprep.subr.mxu0 0.0
    %312 = vmatpush1.msra.mxu0 0.0
    %313 = vmatprep.subr.mxu0 0.0
    %314 = vmatpush1.msra.mxu0 0.0
    %315 = vmatprep.subr.mxu0 0.0
    %316 = vmatpush1.msra.mxu0 0.0
    %317 = vmatprep.subr.mxu0 0.0
    %318 = vmatpush1.msra.mxu0 0.0
    %319 = vmatprep.subr.mxu0 0.0
    %320 = vmatpush1.msra.mxu0 0.0
    %321 = vmatprep.subr.mxu0 0.0
    %322 = vmatpush1.msra.mxu0 0.0
    %323 = vmatprep.mubr.f32.mxu0 0.0
    %324 = vmatmul.mubr.f32.gmra.mrb[0].mxu0 %v257
    %v325 = vpop.f32.mrb[0].mxu0
    %v326 = vadd.f32 0.0, %v325
    %v327 = vpop.f32.mrb[0].mxu0
    %328 = vdwg.mxu0
    %329 = vst.msk [vmem:[#allocation2] sm:$0xff] %vm163, %v326
    %330 = vrot.lane.b32.xlu0 %v152, 104
    %v331 = vpop.permute.xlu0 %330
    %332 = vrot.lane.b32.xlu0 %v152, 96
    %v333 = vpop.permute.xlu0 %332
    %v334 = vsel %vm163, %v331, 0
    %v336 = vsel %vm163, %v333, 0
    %338 = vmatprep.subr.mxu0 0.0
    %339 = vmatpush1.xpose.msra.mxu0 %v336
    %340 = vmatprep.subr.mxu0 0.0
    %341 = vmatpush1.xpose.msra.mxu0 0.0
    %342 = vmatprep.subr.mxu0 0.0
    %343 = vmatpush1.xpose.msra.mxu0 0.0
    %344 = vmatprep.subr.mxu0 0.0
    %345 = vmatpush1.xpose.msra.mxu0 0.0
    %346 = vmatprep.subr.mxu0 0.0
    %347 = vmatpush1.xpose.msra.mxu0 0.0
    %348 = vmatprep.subr.mxu0 0.0
    %349 = vmatpush1.xpose.msra.mxu0 0.0
    %350 = vmatprep.subr.mxu0 0.0
    %351 = vmatpush1.xpose.msra.mxu0 0.0
    %352 = vmatprep.subr.mxu0 0.0
    %353 = vmatpush1.xpose.msra.mxu0 0.0
    %354 = vmatprep.subr.mxu0 0.0
    %355 = vmatpush1.xpose.msra.mxu0 0.0
    %356 = vmatprep.subr.mxu0 0.0
    %357 = vmatpush1.xpose.msra.mxu0 0.0
    %358 = vmatprep.subr.mxu0 0.0
    %359 = vmatpush1.xpose.msra.mxu0 0.0
    %360 = vmatprep.subr.mxu0 0.0
    %361 = vmatpush1.xpose.msra.mxu0 0.0
    %362 = vmatprep.subr.mxu0 0.0
    %363 = vmatpush1.xpose.msra.mxu0 0.0
    %364 = vmatprep.subr.mxu0 0.0
    %365 = vmatpush1.xpose.msra.mxu0 0.0
    %366 = vmatprep.subr.mxu0 0.0
    %367 = vmatpush1.xpose.msra.mxu0 0.0
    %368 = vmatprep.subr.mxu0 0.0
    %369 = vmatpush1.xpose.msra.mxu0 0.0
    %370 = vmatprep.subr.mxu0 0.0
    %371 = vmatpush1.xpose.msra.mxu0 0.0
    %372 = vmatprep.subr.mxu0 0.0
    %373 = vmatpush1.xpose.msra.mxu0 0.0
    %374 = vmatprep.subr.mxu0 0.0
    %375 = vmatpush1.xpose.msra.mxu0 0.0
    %376 = vmatprep.subr.mxu0 0.0
    %377 = vmatpush1.xpose.msra.mxu0 0.0
    %378 = vmatprep.subr.mxu0 0.0
    %379 = vmatpush1.xpose.msra.mxu0 0.0
    %380 = vmatprep.subr.mxu0 0.0
    %381 = vmatpush1.xpose.msra.mxu0 0.0
    %382 = vmatprep.subr.mxu0 0.0
    %383 = vmatpush1.xpose.msra.mxu0 0.0
    %384 = vmatprep.subr.mxu0 0.0
    %385 = vmatpush1.xpose.msra.mxu0 0.0
    %386 = vmatprep.subr.mxu0 0.0
    %387 = vmatpush1.xpose.msra.mxu0 0.0
    %388 = vmatprep.subr.mxu0 0.0
    %389 = vmatpush1.xpose.msra.mxu0 0.0
    %390 = vmatprep.subr.mxu0 0.0
    %391 = vmatpush1.xpose.msra.mxu0 0.0
    %392 = vmatprep.subr.mxu0 0.0
    %393 = vmatpush1.xpose.msra.mxu0 0.0
    %394 = vmatprep.subr.mxu0 0.0
    %395 = vmatpush1.xpose.msra.mxu0 0.0
    %396 = vmatprep.subr.mxu0 0.0
    %397 = vmatpush1.xpose.msra.mxu0 0.0
    %398 = vmatprep.subr.mxu0 0.0
    %399 = vmatpush1.xpose.msra.mxu0 0.0
    %400 = vmatprep.subr.mxu0 0.0
    %401 = vmatpush1.xpose.msra.mxu0 0.0
    %402 = vmatprep.mubr.f32.mxu0 0.0
    %403 = vmatmul.mubr.f32.gmra.mrb[0].mxu0 %v334
    %v404 = vpop.f32.mrb[0].mxu0
    %v405 = vadd.f32 0.0, %v404
    %v406 = vpop.f32.mrb[0].mxu0
    %407 = vdwg.mxu0
    %v408 = vsel %vm163, %v405, -inf
    %409 = vmax.xlane.f32.xlu0 %v408
    %v410 = vpop.xlane.xlu0 %409
    %v411 = vsub.f32 %v405, %v410
    %v412 = vmul.f32 %v411, 1.442695
    %v413 = vpow.pop %v412
    %v414 = vsel %vm163, %v413, 0.0
    %415 = vadd.xlane.f32.xlu0 %v414
    %v416 = vpop.xlane.xlu0 %415
    %v417 = vrcp.pop %v416
    %v418 = vmul.f32 %v416, %v417
    %v419 = vsub.f32 2.0, %v418
    %v420 = vmul.f32 %v417, %v419
    %v421 = vmul.f32 %v413, %v420
    %v422 = vadd.f32 %v252, %v421
    %423 = vrot.lane.b32.xlu0 %v152, 88
    %v424 = vpop.permute.xlu0 %423
    %v427 = vsel %vm163, %v421, 0
    %429 = vmatprep.subr.mxu0 0.0
    %430 = vmatpush1.msra.mxu0 %v424
    %431 = vmatprep.subr.mxu0 0.0
    %432 = vmatpush1.msra.mxu0 0.0
    %433 = vmatprep.subr.mxu0 0.0
    %434 = vmatpush1.msra.mxu0 0.0
    %435 = vmatprep.subr.mxu0 0.0
    %436 = vmatpush1.msra.mxu0 0.0
    %437 = vmatprep.subr.mxu0 0.0
    %438 = vmatpush1.msra.mxu0 0.0
    %439 = vmatprep.subr.mxu0 0.0
    %440 = vmatpush1.msra.mxu0 0.0
    %441 = vmatprep.subr.mxu0 0.0
    %442 = vmatpush1.msra.mxu0 0.0
    %443 = vmatprep.subr.mxu0 0.0
    %444 = vmatpush1.msra.mxu0 0.0
    %445 = vmatprep.subr.mxu0 0.0
    %446 = vmatpush1.msra.mxu0 0.0
    %447 = vmatprep.subr.mxu0 0.0
    %448 = vmatpush1.msra.mxu0 0.0
    %449 = vmatprep.subr.mxu0 0.0
    %450 = vmatpush1.msra.mxu0 0.0
    %451 = vmatprep.subr.mxu0 0.0
    %452 = vmatpush1.msra.mxu0 0.0
    %453 = vmatprep.subr.mxu0 0.0
    %454 = vmatpush1.msra.mxu0 0.0
    %455 = vmatprep.subr.mxu0 0.0
    %456 = vmatpush1.msra.mxu0 0.0
    %457 = vmatprep.subr.mxu0 0.0
    %458 = vmatpush1.msra.mxu0 0.0
    %459 = vmatprep.subr.mxu0 0.0
    %460 = vmatpush1.msra.mxu0 0.0
    %461 = vmatprep.subr.mxu0 0.0
    %462 = vmatpush1.msra.mxu0 0.0
    %463 = vmatprep.subr.mxu0 0.0
    %464 = vmatpush1.msra.mxu0 0.0
    %465 = vmatprep.subr.mxu0 0.0
    %466 = vmatpush1.msra.mxu0 0.0
    %467 = vmatprep.subr.mxu0 0.0
    %468 = vmatpush1.msra.mxu0 0.0
    %469 = vmatprep.subr.mxu0 0.0
    %470 = vmatpush1.msra.mxu0 0.0
    %471 = vmatprep.subr.mxu0 0.0
    %472 = vmatpush1.msra.mxu0 0.0
    %473 = vmatprep.subr.mxu0 0.0
    %474 = vmatpush1.msra.mxu0 0.0
    %475 = vmatprep.subr.mxu0 0.0
    %476 = vmatpush1.msra.mxu0 0.0
    %477 = vmatprep.subr.mxu0 0.0
    %478 = vmatpush1.msra.mxu0 0.0
    %479 = vmatprep.subr.mxu0 0.0
    %480 = vmatpush1.msra.mxu0 0.0
    %481 = vmatprep.subr.mxu0 0.0
    %482 = vmatpush1.msra.mxu0 0.0
    %483 = vmatprep.subr.mxu0 0.0
    %484 = vmatpush1.msra.mxu0 0.0
    %485 = vmatprep.subr.mxu0 0.0
    %486 = vmatpush1.msra.mxu0 0.0
    %487 = vmatprep.subr.mxu0 0.0
    %488 = vmatpush1.msra.mxu0 0.0
    %489 = vmatprep.subr.mxu0 0.0
    %490 = vmatpush1.msra.mxu0 0.0
    %491 = vmatprep.subr.mxu0 0.0
    %492 = vmatpush1.msra.mxu0 0.0
    %493 = vmatprep.mubr.f32.mxu0 0.0
    %494 = vmatmul.mubr.f32.gmra.mrb[0].mxu0 %v427
    %v495 = vpop.f32.mrb[0].mxu0
    %v496 = vadd.f32 0.0, %v495
    %v497 = vpop.f32.mrb[0].mxu0
    %498 = vdwg.mxu0
    %500 = vrot.lane.b32.xlu0 %v496, 8
    %v501 = vpop.permute.xlu0 %500
    %vm503 = vcmask 130112
    %504 = vst.msk [vmem:[#allocation2] sm:$0xff] %vm503, %v501
    %505 = vrot.lane.b32.xlu0 %v152, 80
    %v506 = vpop.permute.xlu0 %505
    %507 = vrot.lane.b32.xlu0 %v152, 72
    %v508 = vpop.permute.xlu0 %507
    %v509 = vsel %vm163, %v506, 0
    %v511 = vsel %vm163, %v508, 0
    %513 = vmatprep.subr.mxu0 0.0
    %514 = vmatpush1.xpose.msra.mxu0 %v511
    %515 = vmatprep.subr.mxu0 0.0
    %516 = vmatpush1.xpose.msra.mxu0 0.0
    %517 = vmatprep.subr.mxu0 0.0
    %518 = vmatpush1.xpose.msra.mxu0 0.0
    %519 = vmatprep.subr.mxu0 0.0
    %520 = vmatpush1.xpose.msra.mxu0 0.0
    %521 = vmatprep.subr.mxu0 0.0
    %522 = vmatpush1.xpose.msra.mxu0 0.0
    %523 = vmatprep.subr.mxu0 0.0
    %524 = vmatpush1.xpose.msra.mxu0 0.0
    %525 = vmatprep.subr.mxu0 0.0
    %526 = vmatpush1.xpose.msra.mxu0 0.0
    %527 = vmatprep.subr.mxu0 0.0
    %528 = vmatpush1.xpose.msra.mxu0 0.0
    %529 = vmatprep.subr.mxu0 0.0
    %530 = vmatpush1.xpose.msra.mxu0 0.0
    %531 = vmatprep.subr.mxu0 0.0
    %532 = vmatpush1.xpose.msra.mxu0 0.0
    %533 = vmatprep.subr.mxu0 0.0
    %534 = vmatpush1.xpose.msra.mxu0 0.0
    %535 = vmatprep.subr.mxu0 0.0
    %536 = vmatpush1.xpose.msra.mxu0 0.0
    %537 = vmatprep.subr.mxu0 0.0
    %538 = vmatpush1.xpose.msra.mxu0 0.0
    %539 = vmatprep.subr.mxu0 0.0
    %540 = vmatpush1.xpose.msra.mxu0 0.0
    %541 = vmatprep.subr.mxu0 0.0
    %542 = vmatpush1.xpose.msra.mxu0 0.0
    %543 = vmatprep.subr.mxu0 0.0
    %544 = vmatpush1.xpose.msra.mxu0 0.0
    %545 = vmatprep.subr.mxu0 0.0
    %546 = vmatpush1.xpose.msra.mxu0 0.0
    %547 = vmatprep.subr.mxu0 0.0
    %548 = vmatpush1.xpose.msra.mxu0 0.0
    %549 = vmatprep.subr.mxu0 0.0
    %550 = vmatpush1.xpose.msra.mxu0 0.0
    %551 = vmatprep.subr.mxu0 0.0
    %552 = vmatpush1.xpose.msra.mxu0 0.0
    %553 = vmatprep.subr.mxu0 0.0
    %554 = vmatpush1.xpose.msra.mxu0 0.0
    %555 = vmatprep.subr.mxu0 0.0
    %556 = vmatpush1.xpose.msra.mxu0 0.0
    %557 = vmatprep.subr.mxu0 0.0
    %558 = vmatpush1.xpose.msra.mxu0 0.0
    %559 = vmatprep.subr.mxu0 0.0
    %560 = vmatpush1.xpose.msra.mxu0 0.0
    %561 = vmatprep.subr.mxu0 0.0
    %562 = vmatpush1.xpose.msra.mxu0 0.0
    %563 = vmatprep.subr.mxu0 0.0
    %564 = vmatpush1.xpose.msra.mxu0 0.0
    %565 = vmatprep.subr.mxu0 0.0
    %566 = vmatpush1.xpose.msra.mxu0 0.0
    %567 = vmatprep.subr.mxu0 0.0
    %568 = vmatpush1.xpose.msra.mxu0 0.0
    %569 = vmatprep.subr.mxu0 0.0
    %570 = vmatpush1.xpose.msra.mxu0 0.0
    %571 = vmatprep.subr.mxu0 0.0
    %572 = vmatpush1.xpose.msra.mxu0 0.0
    %573 = vmatprep.subr.mxu0 0.0
    %574 = vmatpush1.xpose.msra.mxu0 0.0
    %575 = vmatprep.subr.mxu0 0.0
    %576 = vmatpush1.xpose.msra.mxu0 0.0
    %577 = vmatprep.mubr.f32.mxu0 0.0
    %578 = vmatmul.mubr.f32.gmra.mrb[0].mxu0 %v509
    %v579 = vpop.f32.mrb[0].mxu0
    %v580 = vadd.f32 0.0, %v579
    %v581 = vpop.f32.mrb[0].mxu0
    %582 = vdwg.mxu0
    %v583 = vsel %vm163, %v580, -inf
    %584 = vmax.xlane.f32.xlu0 %v583
    %v585 = vpop.xlane.xlu0 %584
    %v586 = vsub.f32 %v580, %v585
    %v587 = vmul.f32 %v586, 1.442695
    %v588 = vpow.pop %v587
    %v589 = vsel %vm163, %v588, 0.0
    %590 = vadd.xlane.f32.xlu0 %v589
    %v591 = vpop.xlane.xlu0 %590
    %v592 = vrcp.pop %v591
    %v593 = vmul.f32 %v591, %v592
    %v594 = vsub.f32 2.0, %v593
    %v595 = vmul.f32 %v592, %v594
    %v596 = vmul.f32 %v588, %v595
    %v597 = vadd.f32 %v422, %v596
    %598 = vrot.lane.b32.xlu0 %v152, 64
    %v599 = vpop.permute.xlu0 %598
    %v602 = vsel %vm163, %v596, 0
    %604 = vmatprep.subr.mxu0 0.0
    %605 = vmatpush1.msra.mxu0 %v599
    %606 = vmatprep.subr.mxu0 0.0
    %607 = vmatpush1.msra.mxu0 0.0
    %608 = vmatprep.subr.mxu0 0.0
    %609 = vmatpush1.msra.mxu0 0.0
    %610 = vmatprep.subr.mxu0 0.0
    %611 = vmatpush1.msra.mxu0 0.0
    %612 = vmatprep.subr.mxu0 0.0
    %613 = vmatpush1.msra.mxu0 0.0
    %614 = vmatprep.subr.mxu0 0.0
    %615 = vmatpush1.msra.mxu0 0.0
    %616 = vmatprep.subr.mxu0 0.0
    %617 = vmatpush1.msra.mxu0 0.0
    %618 = vmatprep.subr.mxu0 0.0
    %619 = vmatpush1.msra.mxu0 0.0
    %620 = vmatprep.subr.mxu0 0.0
    %621 = vmatpush1.msra.mxu0 0.0
    %622 = vmatprep.subr.mxu0 0.0
    %623 = vmatpush1.msra.mxu0 0.0
    %624 = vmatprep.subr.mxu0 0.0
    %625 = vmatpush1.msra.mxu0 0.0
    %626 = vmatprep.subr.mxu0 0.0
    %627 = vmatpush1.msra.mxu0 0.0
    %628 = vmatprep.subr.mxu0 0.0
    %629 = vmatpush1.msra.mxu0 0.0
    %630 = vmatprep.subr.mxu0 0.0
    %631 = vmatpush1.msra.mxu0 0.0
    %632 = vmatprep.subr.mxu0 0.0
    %633 = vmatpush1.msra.mxu0 0.0
    %634 = vmatprep.subr.mxu0 0.0
    %635 = vmatpush1.msra.mxu0 0.0
    %636 = vmatprep.subr.mxu0 0.0
    %637 = vmatpush1.msra.mxu0 0.0
    %638 = vmatprep.subr.mxu0 0.0
    %639 = vmatpush1.msra.mxu0 0.0
    %640 = vmatprep.subr.mxu0 0.0
    %641 = vmatpush1.msra.mxu0 0.0
    %642 = vmatprep.subr.mxu0 0.0
    %643 = vmatpush1.msra.mxu0 0.0
    %644 = vmatprep.subr.mxu0 0.0
    %645 = vmatpush1.msra.mxu0 0.0
    %646 = vmatprep.subr.mxu0 0.0
    %647 = vmatpush1.msra.mxu0 0.0
    %648 = vmatprep.subr.mxu0 0.0
    %649 = vmatpush1.msra.mxu0 0.0
    %650 = vmatprep.subr.mxu0 0.0
    %651 = vmatpush1.msra.mxu0 0.0
    %652 = vmatprep.subr.mxu0 0.0
    %653 = vmatpush1.msra.mxu0 0.0
    %654 = vmatprep.subr.mxu0 0.0
    %655 = vmatpush1.msra.mxu0 0.0
    %656 = vmatprep.subr.mxu0 0.0
    %657 = vmatpush1.msra.mxu0 0.0
    %658 = vmatprep.subr.mxu0 0.0
    %659 = vmatpush1.msra.mxu0 0.0
    %660 = vmatprep.subr.mxu0 0.0
    %661 = vmatpush1.msra.mxu0 0.0
    %662 = vmatprep.subr.mxu0 0.0
    %663 = vmatpush1.msra.mxu0 0.0
    %664 = vmatprep.subr.mxu0 0.0
    %665 = vmatpush1.msra.mxu0 0.0
    %666 = vmatprep.subr.mxu0 0.0
    %667 = vmatpush1.msra.mxu0 0.0
    %668 = vmatprep.mubr.f32.mxu0 0.0
    %669 = vmatmul.mubr.f32.gmra.mrb[0].mxu0 %v602
    %v670 = vpop.f32.mrb[0].mxu0
    %v671 = vadd.f32 0.0, %v670
    %v672 = vpop.f32.mrb[0].mxu0
    %673 = vdwg.mxu0
    %675 = vrot.lane.b32.xlu0 %v671, 16
    %v676 = vpop.permute.xlu0 %675
    %vm678 = vcmask 195712
    %679 = vst.msk [vmem:[#allocation2] sm:$0xff] %vm678, %v676
    %680 = vrot.lane.b32.xlu0 %v152, 56
    %v681 = vpop.permute.xlu0 %680
    %682 = vrot.lane.b32.xlu0 %v152, 48
    %v683 = vpop.permute.xlu0 %682
    %v684 = vsel %vm163, %v681, 0
    %v686 = vsel %vm163, %v683, 0
    %688 = vmatprep.subr.mxu0 0.0
    %689 = vmatpush1.xpose.msra.mxu0 %v686
    %690 = vmatprep.subr.mxu0 0.0
    %691 = vmatpush1.xpose.msra.mxu0 0.0
    %692 = vmatprep.subr.mxu0 0.0
    %693 = vmatpush1.xpose.msra.mxu0 0.0
    %694 = vmatprep.subr.mxu0 0.0
    %695 = vmatpush1.xpose.msra.mxu0 0.0
    %696 = vmatprep.subr.mxu0 0.0
    %697 = vmatpush1.xpose.msra.mxu0 0.0
    %698 = vmatprep.subr.mxu0 0.0
    %699 = vmatpush1.xpose.msra.mxu0 0.0
    %700 = vmatprep.subr.mxu0 0.0
    %701 = vmatpush1.xpose.msra.mxu0 0.0
    %702 = vmatprep.subr.mxu0 0.0
    %703 = vmatpush1.xpose.msra.mxu0 0.0
    %704 = vmatprep.subr.mxu0 0.0
    %705 = vmatpush1.xpose.msra.mxu0 0.0
    %706 = vmatprep.subr.mxu0 0.0
    %707 = vmatpush1.xpose.msra.mxu0 0.0
    %708 = vmatprep.subr.mxu0 0.0
    %709 = vmatpush1.xpose.msra.mxu0 0.0
    %710 = vmatprep.subr.mxu0 0.0
    %711 = vmatpush1.xpose.msra.mxu0 0.0
    %712 = vmatprep.subr.mxu0 0.0
    %713 = vmatpush1.xpose.msra.mxu0 0.0
    %714 = vmatprep.subr.mxu0 0.0
    %715 = vmatpush1.xpose.msra.mxu0 0.0
    %716 = vmatprep.subr.mxu0 0.0
    %717 = vmatpush1.xpose.msra.mxu0 0.0
    %718 = vmatprep.subr.mxu0 0.0
    %719 = vmatpush1.xpose.msra.mxu0 0.0
    %720 = vmatprep.subr.mxu0 0.0
    %721 = vmatpush1.xpose.msra.mxu0 0.0
    %722 = vmatprep.subr.mxu0 0.0
    %723 = vmatpush1.xpose.msra.mxu0 0.0
    %724 = vmatprep.subr.mxu0 0.0
    %725 = vmatpush1.xpose.msra.mxu0 0.0
    %726 = vmatprep.subr.mxu0 0.0
    %727 = vmatpush1.xpose.msra.mxu0 0.0
    %728 = vmatprep.subr.mxu0 0.0
    %729 = vmatpush1.xpose.msra.mxu0 0.0
    %730 = vmatprep.subr.mxu0 0.0
    %731 = vmatpush1.xpose.msra.mxu0 0.0
    %732 = vmatprep.subr.mxu0 0.0
    %733 = vmatpush1.xpose.msra.mxu0 0.0
    %734 = vmatprep.subr.mxu0 0.0
    %735 = vmatpush1.xpose.msra.mxu0 0.0
    %736 = vmatprep.subr.mxu0 0.0
    %737 = vmatpush1.xpose.msra.mxu0 0.0
    %738 = vmatprep.subr.mxu0 0.0
    %739 = vmatpush1.xpose.msra.mxu0 0.0
    %740 = vmatprep.subr.mxu0 0.0
    %741 = vmatpush1.xpose.msra.mxu0 0.0
    %742 = vmatprep.subr.mxu0 0.0
    %743 = vmatpush1.xpose.msra.mxu0 0.0
    %744 = vmatprep.subr.mxu0 0.0
    %745 = vmatpush1.xpose.msra.mxu0 0.0
    %746 = vmatprep.subr.mxu0 0.0
    %747 = vmatpush1.xpose.msra.mxu0 0.0
    %748 = vmatprep.subr.mxu0 0.0
    %749 = vmatpush1.xpose.msra.mxu0 0.0
    %750 = vmatprep.subr.mxu0 0.0
    %751 = vmatpush1.xpose.msra.mxu0 0.0
    %752 = vmatprep.mubr.f32.mxu0 0.0
    %753 = vmatmul.mubr.f32.gmra.mrb[0].mxu0 %v684
    %v754 = vpop.f32.mrb[0].mxu0
    %v755 = vadd.f32 0.0, %v754
    %v756 = vpop.f32.mrb[0].mxu0
    %757 = vdwg.mxu0
    %v758 = vsel %vm163, %v755, -inf
    %759 = vmax.xlane.f32.xlu0 %v758
    %v760 = vpop.xlane.xlu0 %759
    %v761 = vsub.f32 %v755, %v760
    %v762 = vmul.f32 %v761, 1.442695
    %v763 = vpow.pop %v762
    %v764 = vsel %vm163, %v763, 0.0
    %765 = vadd.xlane.f32.xlu0 %v764
    %v766 = vpop.xlane.xlu0 %765
    %v767 = vrcp.pop %v766
    %v768 = vmul.f32 %v766, %v767
    %v769 = vsub.f32 2.0, %v768
    %v770 = vmul.f32 %v767, %v769
    %v771 = vmul.f32 %v763, %v770
    %v772 = vadd.f32 %v597, %v771
    %773 = vrot.lane.b32.xlu0 %v152, 40
    %v774 = vpop.permute.xlu0 %773
    %v777 = vsel %vm163, %v771, 0
    %779 = vmatprep.subr.mxu0 0.0
    %780 = vmatpush1.msra.mxu0 %v774
    %781 = vmatprep.subr.mxu0 0.0
    %782 = vmatpush1.msra.mxu0 0.0
    %783 = vmatprep.subr.mxu0 0.0
    %784 = vmatpush1.msra.mxu0 0.0
    %785 = vmatprep.subr.mxu0 0.0
    %786 = vmatpush1.msra.mxu0 0.0
    %787 = vmatprep.subr.mxu0 0.0
    %788 = vmatpush1.msra.mxu0 0.0
    %789 = vmatprep.subr.mxu0 0.0
    %790 = vmatpush1.msra.mxu0 0.0
    %791 = vmatprep.subr.mxu0 0.0
    %792 = vmatpush1.msra.mxu0 0.0
    %793 = vmatprep.subr.mxu0 0.0
    %794 = vmatpush1.msra.mxu0 0.0
    %795 = vmatprep.subr.mxu0 0.0
    %796 = vmatpush1.msra.mxu0 0.0
    %797 = vmatprep.subr.mxu0 0.0
    %798 = vmatpush1.msra.mxu0 0.0
    %799 = vmatprep.subr.mxu0 0.0
    %800 = vmatpush1.msra.mxu0 0.0
    %801 = vmatprep.subr.mxu0 0.0
    %802 = vmatpush1.msra.mxu0 0.0
    %803 = vmatprep.subr.mxu0 0.0
    %804 = vmatpush1.msra.mxu0 0.0
    %805 = vmatprep.subr.mxu0 0.0
    %806 = vmatpush1.msra.mxu0 0.0
    %807 = vmatprep.subr.mxu0 0.0
    %808 = vmatpush1.msra.mxu0 0.0
    %809 = vmatprep.subr.mxu0 0.0
    %810 = vmatpush1.msra.mxu0 0.0
    %811 = vmatprep.subr.mxu0 0.0
    %812 = vmatpush1.msra.mxu0 0.0
    %813 = vmatprep.subr.mxu0 0.0
    %814 = vmatpush1.msra.mxu0 0.0
    %815 = vmatprep.subr.mxu0 0.0
    %816 = vmatpush1.msra.mxu0 0.0
    %817 = vmatprep.subr.mxu0 0.0
    %818 = vmatpush1.msra.mxu0 0.0
    %819 = vmatprep.subr.mxu0 0.0
    %820 = vmatpush1.msra.mxu0 0.0
    %821 = vmatprep.subr.mxu0 0.0
    %822 = vmatpush1.msra.mxu0 0.0
    %823 = vmatprep.subr.mxu0 0.0
    %824 = vmatpush1.msra.mxu0 0.0
    %825 = vmatprep.subr.mxu0 0.0
    %826 = vmatpush1.msra.mxu0 0.0
    %827 = vmatprep.subr.mxu0 0.0
    %828 = vmatpush1.msra.mxu0 0.0
    %829 = vmatprep.subr.mxu0 0.0
    %830 = vmatpush1.msra.mxu0 0.0
    %831 = vmatprep.subr.mxu0 0.0
    %832 = vmatpush1.msra.mxu0 0.0
    %833 = vmatprep.subr.mxu0 0.0
    %834 = vmatpush1.msra.mxu0 0.0
    %835 = vmatprep.subr.mxu0 0.0
    %836 = vmatpush1.msra.mxu0 0.0
    %837 = vmatprep.subr.mxu0 0.0
    %838 = vmatpush1.msra.mxu0 0.0
    %839 = vmatprep.subr.mxu0 0.0
    %840 = vmatpush1.msra.mxu0 0.0
    %841 = vmatprep.subr.mxu0 0.0
    %842 = vmatpush1.msra.mxu0 0.0
    %843 = vmatprep.mubr.f32.mxu0 0.0
    %844 = vmatmul.mubr.f32.gmra.mrb[0].mxu0 %v777
    %v845 = vpop.f32.mrb[0].mxu0
    %v846 = vadd.f32 0.0, %v845
    %v847 = vpop.f32.mrb[0].mxu0
    %848 = vdwg.mxu0
    %850 = vrot.lane.b32.xlu0 %v846, 24
    %v851 = vpop.permute.xlu0 %850
    %vm853 = vcmask 261312
    %854 = vst.msk [vmem:[#allocation2] sm:$0xff] %vm853, %v851
    %v855 = vmul.f32 %v772, 0.25
    %856 = vst.msk [vmem:[#allocation10] sm:$0xff] %vm163, %v855
    %858 = vrot.lane.b32.xlu0 %v157, 120
    %v859 = vpop.permute.xlu0 %858
    %v860 = vsel %vm163, %v157, 0
    %v862 = vsel %vm163, %v859, 0
    %864 = vmatprep.subr.mxu0 0.0
    %865 = vmatpush1.xpose.msra.mxu0 %v862
    %866 = vmatprep.subr.mxu0 0.0
    %867 = vmatpush1.xpose.msra.mxu0 0.0
    %868 = vmatprep.subr.mxu0 0.0
    %869 = vmatpush1.xpose.msra.mxu0 0.0
    %870 = vmatprep.subr.mxu0 0.0
    %871 = vmatpush1.xpose.msra.mxu0 0.0
    %872 = vmatprep.subr.mxu0 0.0
    %873 = vmatpush1.xpose.msra.mxu0 0.0
    %874 = vmatprep.subr.mxu0 0.0
    %875 = vmatpush1.xpose.msra.mxu0 0.0
    %876 = vmatprep.subr.mxu0 0.0
    %877 = vmatpush1.xpose.msra.mxu0 0.0
    %878 = vmatprep.subr.mxu0 0.0
    %879 = vmatpush1.xpose.msra.mxu0 0.0
    %880 = vmatprep.subr.mxu0 0.0
    %881 = vmatpush1.xpose.msra.mxu0 0.0
    %882 = vmatprep.subr.mxu0 0.0
    %883 = vmatpush1.xpose.msra.mxu0 0.0
    %884 = vmatprep.subr.mxu0 0.0
    %885 = vmatpush1.xpose.msra.mxu0 0.0
    %886 = vmatprep.subr.mxu0 0.0
    %887 = vmatpush1.xpose.msra.mxu0 0.0
    %888 = vmatprep.subr.mxu0 0.0
    %889 = vmatpush1.xpose.msra.mxu0 0.0
    %890 = vmatprep.subr.mxu0 0.0
    %891 = vmatpush1.xpose.msra.mxu0 0.0
    %892 = vmatprep.subr.mxu0 0.0
    %893 = vmatpush1.xpose.msra.mxu0 0.0
    %894 = vmatprep.subr.mxu0 0.0
    %895 = vmatpush1.xpose.msra.mxu0 0.0
    %896 = vmatprep.subr.mxu0 0.0
    %897 = vmatpush1.xpose.msra.mxu0 0.0
    %898 = vmatprep.subr.mxu0 0.0
    %899 = vmatpush1.xpose.msra.mxu0 0.0
    %900 = vmatprep.subr.mxu0 0.0
    %901 = vmatpush1.xpose.msra.mxu0 0.0
    %902 = vmatprep.subr.mxu0 0.0
    %903 = vmatpush1.xpose.msra.mxu0 0.0
    %904 = vmatprep.subr.mxu0 0.0
    %905 = vmatpush1.xpose.msra.mxu0 0.0
    %906 = vmatprep.subr.mxu0 0.0
    %907 = vmatpush1.xpose.msra.mxu0 0.0
    %908 = vmatprep.subr.mxu0 0.0
    %909 = vmatpush1.xpose.msra.mxu0 0.0
    %910 = vmatprep.subr.mxu0 0.0
    %911 = vmatpush1.xpose.msra.mxu0 0.0
    %912 = vmatprep.subr.mxu0 0.0
    %913 = vmatpush1.xpose.msra.mxu0 0.0
    %914 = vmatprep.subr.mxu0 0.0
    %915 = vmatpush1.xpose.msra.mxu0 0.0
    %916 = vmatprep.subr.mxu0 0.0
    %917 = vmatpush1.xpose.msra.mxu0 0.0
    %918 = vmatprep.subr.mxu0 0.0
    %919 = vmatpush1.xpose.msra.mxu0 0.0
    %920 = vmatprep.subr.mxu0 0.0
    %921 = vmatpush1.xpose.msra.mxu0 0.0
    %922 = vmatprep.subr.mxu0 0.0
    %923 = vmatpush1.xpose.msra.mxu0 0.0
    %924 = vmatprep.subr.mxu0 0.0
    %925 = vmatpush1.xpose.msra.mxu0 0.0
    %926 = vmatprep.subr.mxu0 0.0
    %927 = vmatpush1.xpose.msra.mxu0 0.0
    %928 = vmatprep.mubr.f32.mxu0 0.0
    %929 = vmatmul.mubr.f32.gmra.mrb[0].mxu0 %v860
    %v930 = vpop.f32.mrb[0].mxu0
    %v931 = vadd.f32 0.0, %v930
    %v932 = vpop.f32.mrb[0].mxu0
    %933 = vdwg.mxu0
    %v934 = vsel %vm163, %v931, -inf
    %935 = vmax.xlane.f32.xlu0 %v934
    %v936 = vpop.xlane.xlu0 %935
    %v937 = vsub.f32 %v931, %v936
    %v938 = vmul.f32 %v937, 1.442695
    %v939 = vpow.pop %v938
    %v940 = vsel %vm163, %v939, 0.0
    %941 = vadd.xlane.f32.xlu0 %v940
    %v942 = vpop.xlane.xlu0 %941
    %v943 = vrcp.pop %v942
    %v944 = vmul.f32 %v942, %v943
    %v945 = vsub.f32 2.0, %v944
    %v946 = vmul.f32 %v943, %v945
    %v947 = vmul.f32 %v939, %v946
    %v948 = vadd.f32 %v947, 0.0
    %949 = vrot.lane.b32.xlu0 %v157, 112
    %v950 = vpop.permute.xlu0 %949
    %v953 = vsel %vm163, %v947, 0
    %955 = vmatprep.subr.mxu0 0.0
    %956 = vmatpush1.msra.mxu0 %v950
    %957 = vmatprep.subr.mxu0 0.0
    %958 = vmatpush1.msra.mxu0 0.0
    %959 = vmatprep.subr.mxu0 0.0
    %960 = vmatpush1.msra.mxu0 0.0
    %961 = vmatprep.subr.mxu0 0.0
    %962 = vmatpush1.msra.mxu0 0.0
    %963 = vmatprep.subr.mxu0 0.0
    %964 = vmatpush1.msra.mxu0 0.0
    %965 = vmatprep.subr.mxu0 0.0
    %966 = vmatpush1.msra.mxu0 0.0
    %967 = vmatprep.subr.mxu0 0.0
    %968 = vmatpush1.msra.mxu0 0.0
    %969 = vmatprep.subr.mxu0 0.0
    %970 = vmatpush1.msra.mxu0 0.0
    %971 = vmatprep.subr.mxu0 0.0
    %972 = vmatpush1.msra.mxu0 0.0
    %973 = vmatprep.subr.mxu0 0.0
    %974 = vmatpush1.msra.mxu0 0.0
    %975 = vmatprep.subr.mxu0 0.0
    %976 = vmatpush1.msra.mxu0 0.0
    %977 = vmatprep.subr.mxu0 0.0
    %978 = vmatpush1.msra.mxu0 0.0
    %979 = vmatprep.subr.mxu0 0.0
    %980 = vmatpush1.msra.mxu0 0.0
    %981 = vmatprep.subr.mxu0 0.0
    %982 = vmatpush1.msra.mxu0 0.0
    %983 = vmatprep.subr.mxu0 0.0
    %984 = vmatpush1.msra.mxu0 0.0
    %985 = vmatprep.subr.mxu0 0.0
    %986 = vmatpush1.msra.mxu0 0.0
    %987 = vmatprep.subr.mxu0 0.0
    %988 = vmatpush1.msra.mxu0 0.0
    %989 = vmatprep.subr.mxu0 0.0
    %990 = vmatpush1.msra.mxu0 0.0
    %991 = vmatprep.subr.mxu0 0.0
    %992 = vmatpush1.msra.mxu0 0.0
    %993 = vmatprep.subr.mxu0 0.0
    %994 = vmatpush1.msra.mxu0 0.0
    %995 = vmatprep.subr.mxu0 0.0
    %996 = vmatpush1.msra.mxu0 0.0
    %997 = vmatprep.subr.mxu0 0.0
    %998 = vmatpush1.msra.mxu0 0.0
    %999 = vmatprep.subr.mxu0 0.0
    %1000 = vmatpush1.msra.mxu0 0.0
    %1001 = vmatprep.subr.mxu0 0.0
    %1002 = vmatpush1.msra.mxu0 0.0
    %1003 = vmatprep.subr.mxu0 0.0
    %1004 = vmatpush1.msra.mxu0 0.0
    %1005 = vmatprep.subr.mxu0 0.0
    %1006 = vmatpush1.msra.mxu0 0.0
    %1007 = vmatprep.subr.mxu0 0.0
    %1008 = vmatpush1.msra.mxu0 0.0
    %1009 = vmatprep.subr.mxu0 0.0
    %1010 = vmatpush1.msra.mxu0 0.0
    %1011 = vmatprep.subr.mxu0 0.0
    %1012 = vmatpush1.msra.mxu0 0.0
    %1013 = vmatprep.subr.mxu0 0.0
    %1014 = vmatpush1.msra.mxu0 0.0
    %1015 = vmatprep.subr.mxu0 0.0
    %1016 = vmatpush1.msra.mxu0 0.0
    %1017 = vmatprep.subr.mxu0 0.0
    %1018 = vmatpush1.msra.mxu0 0.0
    %1019 = vmatprep.mubr.f32.mxu0 0.0
    %1020 = vmatmul.mubr.f32.gmra.mrb[0].mxu0 %v953
    %v1021 = vpop.f32.mrb[0].mxu0
    %v1022 = vadd.f32 0.0, %v1021
    %v1023 = vpop.f32.mrb[0].mxu0
    %1024 = vdwg.mxu0
    %1025 = vst.msk [vmem:[#allocation2 + $0x8] sm:$0xff] %vm163, %v1022
    %1026 = vrot.lane.b32.xlu0 %v157, 104
    %v1027 = vpop.permute.xlu0 %1026
    %1028 = vrot.lane.b32.xlu0 %v157, 96
    %v1029 = vpop.permute.xlu0 %1028
    %v1030 = vsel %vm163, %v1027, 0
    %v1032 = vsel %vm163, %v1029, 0
    %1034 = vmatprep.subr.mxu0 0.0
    %1035 = vmatpush1.xpose.msra.mxu0 %v1032
    %1036 = vmatprep.subr.mxu0 0.0
    %1037 = vmatpush1.xpose.msra.mxu0 0.0
    %1038 = vmatprep.subr.mxu0 0.0
    %1039 = vmatpush1.xpose.msra.mxu0 0.0
    %1040 = vmatprep.subr.mxu0 0.0
    %1041 = vmatpush1.xpose.msra.mxu0 0.0
    %1042 = vmatprep.subr.mxu0 0.0
    %1043 = vmatpush1.xpose.msra.mxu0 0.0
    %1044 = vmatprep.subr.mxu0 0.0
    %1045 = vmatpush1.xpose.msra.mxu0 0.0
    %1046 = vmatprep.subr.mxu0 0.0
    %1047 = vmatpush1.xpose.msra.mxu0 0.0
    %1048 = vmatprep.subr.mxu0 0.0
    %1049 = vmatpush1.xpose.msra.mxu0 0.0
    %1050 = vmatprep.subr.mxu0 0.0
    %1051 = vmatpush1.xpose.msra.mxu0 0.0
    %1052 = vmatprep.subr.mxu0 0.0
    %1053 = vmatpush1.xpose.msra.mxu0 0.0
    %1054 = vmatprep.subr.mxu0 0.0
    %1055 = vmatpush1.xpose.msra.mxu0 0.0
    %1056 = vmatprep.subr.mxu0 0.0
    %1057 = vmatpush1.xpose.msra.mxu0 0.0
    %1058 = vmatprep.subr.mxu0 0.0
    %1059 = vmatpush1.xpose.msra.mxu0 0.0
    %1060 = vmatprep.subr.mxu0 0.0
    %1061 = vmatpush1.xpose.msra.mxu0 0.0
    %1062 = vmatprep.subr.mxu0 0.0
    %1063 = vmatpush1.xpose.msra.mxu0 0.0
    %1064 = vmatprep.subr.mxu0 0.0
    %1065 = vmatpush1.xpose.msra.mxu0 0.0
    %1066 = vmatprep.subr.mxu0 0.0
    %1067 = vmatpush1.xpose.msra.mxu0 0.0
    %1068 = vmatprep.subr.mxu0 0.0
    %1069 = vmatpush1.xpose.msra.mxu0 0.0
    %1070 = vmatprep.subr.mxu0 0.0
    %1071 = vmatpush1.xpose.msra.mxu0 0.0
    %1072 = vmatprep.subr.mxu0 0.0
    %1073 = vmatpush1.xpose.msra.mxu0 0.0
    %1074 = vmatprep.subr.mxu0 0.0
    %1075 = vmatpush1.xpose.msra.mxu0 0.0
    %1076 = vmatprep.subr.mxu0 0.0
    %1077 = vmatpush1.xpose.msra.mxu0 0.0
    %1078 = vmatprep.subr.mxu0 0.0
    %1079 = vmatpush1.xpose.msra.mxu0 0.0
    %1080 = vmatprep.subr.mxu0 0.0
    %1081 = vmatpush1.xpose.msra.mxu0 0.0
    %1082 = vmatprep.subr.mxu0 0.0
    %1083 = vmatpush1.xpose.msra.mxu0 0.0
    %1084 = vmatprep.subr.mxu0 0.0
    %1085 = vmatpush1.xpose.msra.mxu0 0.0
    %1086 = vmatprep.subr.mxu0 0.0
    %1087 = vmatpush1.xpose.msra.mxu0 0.0
    %1088 = vmatprep.subr.mxu0 0.0
    %1089 = vmatpush1.xpose.msra.mxu0 0.0
    %1090 = vmatprep.subr.mxu0 0.0
    %1091 = vmatpush1.xpose.msra.mxu0 0.0
    %1092 = vmatprep.subr.mxu0 0.0
    %1093 = vmatpush1.xpose.msra.mxu0 0.0
    %1094 = vmatprep.subr.mxu0 0.0
    %1095 = vmatpush1.xpose.msra.mxu0 0.0
    %1096 = vmatprep.subr.mxu0 0.0
    %1097 = vmatpush1.xpose.msra.mxu0 0.0
    %1098 = vmatprep.mubr.f32.mxu0 0.0
    %1099 = vmatmul.mubr.f32.gmra.mrb[0].mxu0 %v1030
    %v1100 = vpop.f32.mrb[0].mxu0
    %v1101 = vadd.f32 0.0, %v1100
    %v1102 = vpop.f32.mrb[0].mxu0
    %1103 = vdwg.mxu0
    %v1104 = vsel %vm163, %v1101, -inf
    %1105 = vmax.xlane.f32.xlu0 %v1104
    %v1106 = vpop.xlane.xlu0 %1105
    %v1107 = vsub.f32 %v1101, %v1106
    %v1108 = vmul.f32 %v1107, 1.442695
    %v1109 = vpow.pop %v1108
    %v1110 = vsel %vm163, %v1109, 0.0
    %1111 = vadd.xlane.f32.xlu0 %v1110
    %v1112 = vpop.xlane.xlu0 %1111
    %v1113 = vrcp.pop %v1112
    %v1114 = vmul.f32 %v1112, %v1113
    %v1115 = vsub.f32 2.0, %v1114
    %v1116 = vmul.f32 %v1113, %v1115
    %v1117 = vmul.f32 %v1109, %v1116
    %v1118 = vadd.f32 %v948, %v1117
    %1119 = vrot.lane.b32.xlu0 %v157, 88
    %v1120 = vpop.permute.xlu0 %1119
    %v1123 = vsel %vm163, %v1117, 0
    %1125 = vmatprep.subr.mxu0 0.0
    %1126 = vmatpush1.msra.mxu0 %v1120
    %1127 = vmatprep.subr.mxu0 0.0
    %1128 = vmatpush1.msra.mxu0 0.0
    %1129 = vmatprep.subr.mxu0 0.0
    %1130 = vmatpush1.msra.mxu0 0.0
    %1131 = vmatprep.subr.mxu0 0.0
    %1132 = vmatpush1.msra.mxu0 0.0
    %1133 = vmatprep.subr.mxu0 0.0
    %1134 = vmatpush1.msra.mxu0 0.0
    %1135 = vmatprep.subr.mxu0 0.0
    %1136 = vmatpush1.msra.mxu0 0.0
    %1137 = vmatprep.subr.mxu0 0.0
    %1138 = vmatpush1.msra.mxu0 0.0
    %1139 = vmatprep.subr.mxu0 0.0
    %1140 = vmatpush1.msra.mxu0 0.0
    %1141 = vmatprep.subr.mxu0 0.0
    %1142 = vmatpush1.msra.mxu0 0.0
    %1143 = vmatprep.subr.mxu0 0.0
    %1144 = vmatpush1.msra.mxu0 0.0
    %1145 = vmatprep.subr.mxu0 0.0
    %1146 = vmatpush1.msra.mxu0 0.0
    %1147 = vmatprep.subr.mxu0 0.0
    %1148 = vmatpush1.msra.mxu0 0.0
    %1149 = vmatprep.subr.mxu0 0.0
    %1150 = vmatpush1.msra.mxu0 0.0
    %1151 = vmatprep.subr.mxu0 0.0
    %1152 = vmatpush1.msra.mxu0 0.0
    %1153 = vmatprep.subr.mxu0 0.0
    %1154 = vmatpush1.msra.mxu0 0.0
    %1155 = vmatprep.subr.mxu0 0.0
    %1156 = vmatpush1.msra.mxu0 0.0
    %1157 = vmatprep.subr.mxu0 0.0
    %1158 = vmatpush1.msra.mxu0 0.0
    %1159 = vmatprep.subr.mxu0 0.0
    %1160 = vmatpush1.msra.mxu0 0.0
    %1161 = vmatprep.subr.mxu0 0.0
    %1162 = vmatpush1.msra.mxu0 0.0
    %1163 = vmatprep.subr.mxu0 0.0
    %1164 = vmatpush1.msra.mxu0 0.0
    %1165 = vmatprep.subr.mxu0 0.0
    %1166 = vmatpush1.msra.mxu0 0.0
    %1167 = vmatprep.subr.mxu0 0.0
    %1168 = vmatpush1.msra.mxu0 0.0
    %1169 = vmatprep.subr.mxu0 0.0
    %1170 = vmatpush1.msra.mxu0 0.0
    %1171 = vmatprep.subr.mxu0 0.0
    %1172 = vmatpush1.msra.mxu0 0.0
    %1173 = vmatprep.subr.mxu0 0.0
    %1174 = vmatpush1.msra.mxu0 0.0
    %1175 = vmatprep.subr.mxu0 0.0
    %1176 = vmatpush1.msra.mxu0 0.0
    %1177 = vmatprep.subr.mxu0 0.0
    %1178 = vmatpush1.msra.mxu0 0.0
    %1179 = vmatprep.subr.mxu0 0.0
    %1180 = vmatpush1.msra.mxu0 0.0
    %1181 = vmatprep.subr.mxu0 0.0
    %1182 = vmatpush1.msra.mxu0 0.0
    %1183 = vmatprep.subr.mxu0 0.0
    %1184 = vmatpush1.msra.mxu0 0.0
    %1185 = vmatprep.subr.mxu0 0.0
    %1186 = vmatpush1.msra.mxu0 0.0
    %1187 = vmatprep.subr.mxu0 0.0
    %1188 = vmatpush1.msra.mxu0 0.0
    %1189 = vmatprep.mubr.f32.mxu0 0.0
    %1190 = vmatmul.mubr.f32.gmra.mrb[0].mxu0 %v1123
    %v1191 = vpop.f32.mrb[0].mxu0
    %v1192 = vadd.f32 0.0, %v1191
    %v1193 = vpop.f32.mrb[0].mxu0
    %1194 = vdwg.mxu0
    %1196 = vrot.lane.b32.xlu0 %v1192, 8
    %v1197 = vpop.permute.xlu0 %1196
    %1199 = vst.msk [vmem:[#allocation2 + $0x8] sm:$0xff] %vm503, %v1197
    %1200 = vrot.lane.b32.xlu0 %v157, 80
    %v1201 = vpop.permute.xlu0 %1200
    %1202 = vrot.lane.b32.xlu0 %v157, 72
    %v1203 = vpop.permute.xlu0 %1202
    %v1204 = vsel %vm163, %v1201, 0
    %v1206 = vsel %vm163, %v1203, 0
    %1208 = vmatprep.subr.mxu0 0.0
    %1209 = vmatpush1.xpose.msra.mxu0 %v1206
    %1210 = vmatprep.subr.mxu0 0.0
    %1211 = vmatpush1.xpose.msra.mxu0 0.0
    %1212 = vmatprep.subr.mxu0 0.0
    %1213 = vmatpush1.xpose.msra.mxu0 0.0
    %1214 = vmatprep.subr.mxu0 0.0
    %1215 = vmatpush1.xpose.msra.mxu0 0.0
    %1216 = vmatprep.subr.mxu0 0.0
    %1217 = vmatpush1.xpose.msra.mxu0 0.0
    %1218 = vmatprep.subr.mxu0 0.0
    %1219 = vmatpush1.xpose.msra.mxu0 0.0
    %1220 = vmatprep.subr.mxu0 0.0
    %1221 = vmatpush1.xpose.msra.mxu0 0.0
    %1222 = vmatprep.subr.mxu0 0.0
    %1223 = vmatpush1.xpose.msra.mxu0 0.0
    %1224 = vmatprep.subr.mxu0 0.0
    %1225 = vmatpush1.xpose.msra.mxu0 0.0
    %1226 = vmatprep.subr.mxu0 0.0
    %1227 = vmatpush1.xpose.msra.mxu0 0.0
    %1228 = vmatprep.subr.mxu0 0.0
    %1229 = vmatpush1.xpose.msra.mxu0 0.0
    %1230 = vmatprep.subr.mxu0 0.0
    %1231 = vmatpush1.xpose.msra.mxu0 0.0
    %1232 = vmatprep.subr.mxu0 0.0
    %1233 = vmatpush1.xpose.msra.mxu0 0.0
    %1234 = vmatprep.subr.mxu0 0.0
    %1235 = vmatpush1.xpose.msra.mxu0 0.0
    %1236 = vmatprep.subr.mxu0 0.0
    %1237 = vmatpush1.xpose.msra.mxu0 0.0
    %1238 = vmatprep.subr.mxu0 0.0
    %1239 = vmatpush1.xpose.msra.mxu0 0.0
    %1240 = vmatprep.subr.mxu0 0.0
    %1241 = vmatpush1.xpose.msra.mxu0 0.0
    %1242 = vmatprep.subr.mxu0 0.0
    %1243 = vmatpush1.xpose.msra.mxu0 0.0
    %1244 = vmatprep.subr.mxu0 0.0
    %1245 = vmatpush1.xpose.msra.mxu0 0.0
    %1246 = vmatprep.subr.mxu0 0.0
    %1247 = vmatpush1.xpose.msra.mxu0 0.0
    %1248 = vmatprep.subr.mxu0 0.0
    %1249 = vmatpush1.xpose.msra.mxu0 0.0
    %1250 = vmatprep.subr.mxu0 0.0
    %1251 = vmatpush1.xpose.msra.mxu0 0.0
    %1252 = vmatprep.subr.mxu0 0.0
    %1253 = vmatpush1.xpose.msra.mxu0 0.0
    %1254 = vmatprep.subr.mxu0 0.0
    %1255 = vmatpush1.xpose.msra.mxu0 0.0
    %1256 = vmatprep.subr.mxu0 0.0
    %1257 = vmatpush1.xpose.msra.mxu0 0.0
    %1258 = vmatprep.subr.mxu0 0.0
    %1259 = vmatpush1.xpose.msra.mxu0 0.0
    %1260 = vmatprep.subr.mxu0 0.0
    %1261 = vmatpush1.xpose.msra.mxu0 0.0
    %1262 = vmatprep.subr.mxu0 0.0
    %1263 = vmatpush1.xpose.msra.mxu0 0.0
    %1264 = vmatprep.subr.mxu0 0.0
    %1265 = vmatpush1.xpose.msra.mxu0 0.0
    %1266 = vmatprep.subr.mxu0 0.0
    %1267 = vmatpush1.xpose.msra.mxu0 0.0
    %1268 = vmatprep.subr.mxu0 0.0
    %1269 = vmatpush1.xpose.msra.mxu0 0.0
    %1270 = vmatprep.subr.mxu0 0.0
    %1271 = vmatpush1.xpose.msra.mxu0 0.0
    %1272 = vmatprep.mubr.f32.mxu0 0.0
    %1273 = vmatmul.mubr.f32.gmra.mrb[0].mxu0 %v1204
    %v1274 = vpop.f32.mrb[0].mxu0
    %v1275 = vadd.f32 0.0, %v1274
    %v1276 = vpop.f32.mrb[0].mxu0
    %1277 = vdwg.mxu0
    %v1278 = vsel %vm163, %v1275, -inf
    %1279 = vmax.xlane.f32.xlu0 %v1278
    %v1280 = vpop.xlane.xlu0 %1279
    %v1281 = vsub.f32 %v1275, %v1280
    %v1282 = vmul.f32 %v1281, 1.442695
    %v1283 = vpow.pop %v1282
    %v1284 = vsel %vm163, %v1283, 0.0
    %1285 = vadd.xlane.f32.xlu0 %v1284
    %v1286 = vpop.xlane.xlu0 %1285
    %v1287 = vrcp.pop %v1286
    %v1288 = vmul.f32 %v1286, %v1287
    %v1289 = vsub.f32 2.0, %v1288
    %v1290 = vmul.f32 %v1287, %v1289
    %v1291 = vmul.f32 %v1283, %v1290
    %v1292 = vadd.f32 %v1118, %v1291
    %1293 = vrot.lane.b32.xlu0 %v157, 64
    %v1294 = vpop.permute.xlu0 %1293
    %v1297 = vsel %vm163, %v1291, 0
    %1299 = vmatprep.subr.mxu0 0.0
    %1300 = vmatpush1.msra.mxu0 %v1294
    %1301 = vmatprep.subr.mxu0 0.0
    %1302 = vmatpush1.msra.mxu0 0.0
    %1303 = vmatprep.subr.mxu0 0.0
    %1304 = vmatpush1.msra.mxu0 0.0
    %1305 = vmatprep.subr.mxu0 0.0
    %1306 = vmatpush1.msra.mxu0 0.0
    %1307 = vmatprep.subr.mxu0 0.0
    %1308 = vmatpush1.msra.mxu0 0.0
    %1309 = vmatprep.subr.mxu0 0.0
    %1310 = vmatpush1.msra.mxu0 0.0
    %1311 = vmatprep.subr.mxu0 0.0
    %1312 = vmatpush1.msra.mxu0 0.0
    %1313 = vmatprep.subr.mxu0 0.0
    %1314 = vmatpush1.msra.mxu0 0.0
    %1315 = vmatprep.subr.mxu0 0.0
    %1316 = vmatpush1.msra.mxu0 0.0
    %1317 = vmatprep.subr.mxu0 0.0
    %1318 = vmatpush1.msra.mxu0 0.0
    %1319 = vmatprep.subr.mxu0 0.0
    %1320 = vmatpush1.msra.mxu0 0.0
    %1321 = vmatprep.subr.mxu0 0.0
    %1322 = vmatpush1.msra.mxu0 0.0
    %1323 = vmatprep.subr.mxu0 0.0
    %1324 = vmatpush1.msra.mxu0 0.0
    %1325 = vmatprep.subr.mxu0 0.0
    %1326 = vmatpush1.msra.mxu0 0.0
    %1327 = vmatprep.subr.mxu0 0.0
    %1328 = vmatpush1.msra.mxu0 0.0
    %1329 = vmatprep.subr.mxu0 0.0
    %1330 = vmatpush1.msra.mxu0 0.0
    %1331 = vmatprep.subr.mxu0 0.0
    %1332 = vmatpush1.msra.mxu0 0.0
    %1333 = vmatprep.subr.mxu0 0.0
    %1334 = vmatpush1.msra.mxu0 0.0
    %1335 = vmatprep.subr.mxu0 0.0
    %1336 = vmatpush1.msra.mxu0 0.0
    %1337 = vmatprep.subr.mxu0 0.0
    %1338 = vmatpush1.msra.mxu0 0.0
    %1339 = vmatprep.subr.mxu0 0.0
    %1340 = vmatpush1.msra.mxu0 0.0
    %1341 = vmatprep.subr.mxu0 0.0
    %1342 = vmatpush1.msra.mxu0 0.0
    %1343 = vmatprep.subr.mxu0 0.0
    %1344 = vmatpush1.msra.mxu0 0.0
    %1345 = vmatprep.subr.mxu0 0.0
    %1346 = vmatpush1.msra.mxu0 0.0
    %1347 = vmatprep.subr.mxu0 0.0
    %1348 = vmatpush1.msra.mxu0 0.0
    %1349 = vmatprep.subr.mxu0 0.0
    %1350 = vmatpush1.msra.mxu0 0.0
    %1351 = vmatprep.subr.mxu0 0.0
    %1352 = vmatpush1.msra.mxu0 0.0
    %1353 = vmatprep.subr.mxu0 0.0
    %1354 = vmatpush1.msra.mxu0 0.0
    %1355 = vmatprep.subr.mxu0 0.0
    %1356 = vmatpush1.msra.mxu0 0.0
    %1357 = vmatprep.subr.mxu0 0.0
    %1358 = vmatpush1.msra.mxu0 0.0
    %1359 = vmatprep.subr.mxu0 0.0
    %1360 = vmatpush1.msra.mxu0 0.0
    %1361 = vmatprep.subr.mxu0 0.0
    %1362 = vmatpush1.msra.mxu0 0.0
    %1363 = vmatprep.mubr.f32.mxu0 0.0
    %1364 = vmatmul.mubr.f32.gmra.mrb[0].mxu0 %v1297
    %v1365 = vpop.f32.mrb[0].mxu0
    %v1366 = vadd.f32 0.0, %v1365
    %v1367 = vpop.f32.mrb[0].mxu0
    %1368 = vdwg.mxu0
    %1370 = vrot.lane.b32.xlu0 %v1366, 16
    %v1371 = vpop.permute.xlu0 %1370
    %1373 = vst.msk [vmem:[#allocation2 + $0x8] sm:$0xff] %vm678, %v1371
    %1374 = vrot.lane.b32.xlu0 %v157, 56
    %v1375 = vpop.permute.xlu0 %1374
    %1376 = vrot.lane.b32.xlu0 %v157, 48
    %v1377 = vpop.permute.xlu0 %1376
    %v1378 = vsel %vm163, %v1375, 0
    %v1380 = vsel %vm163, %v1377, 0
    %1382 = vmatprep.subr.mxu0 0.0
    %1383 = vmatpush1.xpose.msra.mxu0 %v1380
    %1384 = vmatprep.subr.mxu0 0.0
    %1385 = vmatpush1.xpose.msra.mxu0 0.0
    %1386 = vmatprep.subr.mxu0 0.0
    %1387 = vmatpush1.xpose.msra.mxu0 0.0
    %1388 = vmatprep.subr.mxu0 0.0
    %1389 = vmatpush1.xpose.msra.mxu0 0.0
    %1390 = vmatprep.subr.mxu0 0.0
    %1391 = vmatpush1.xpose.msra.mxu0 0.0
    %1392 = vmatprep.subr.mxu0 0.0
    %1393 = vmatpush1.xpose.msra.mxu0 0.0
    %1394 = vmatprep.subr.mxu0 0.0
    %1395 = vmatpush1.xpose.msra.mxu0 0.0
    %1396 = vmatprep.subr.mxu0 0.0
    %1397 = vmatpush1.xpose.msra.mxu0 0.0
    %1398 = vmatprep.subr.mxu0 0.0
    %1399 = vmatpush1.xpose.msra.mxu0 0.0
    %1400 = vmatprep.subr.mxu0 0.0
    %1401 = vmatpush1.xpose.msra.mxu0 0.0
    %1402 = vmatprep.subr.mxu0 0.0
    %1403 = vmatpush1.xpose.msra.mxu0 0.0
    %1404 = vmatprep.subr.mxu0 0.0
    %1405 = vmatpush1.xpose.msra.mxu0 0.0
    %1406 = vmatprep.subr.mxu0 0.0
    %1407 = vmatpush1.xpose.msra.mxu0 0.0
    %1408 = vmatprep.subr.mxu0 0.0
    %1409 = vmatpush1.xpose.msra.mxu0 0.0
    %1410 = vmatprep.subr.mxu0 0.0
    %1411 = vmatpush1.xpose.msra.mxu0 0.0
    %1412 = vmatprep.subr.mxu0 0.0
    %1413 = vmatpush1.xpose.msra.mxu0 0.0
    %1414 = vmatprep.subr.mxu0 0.0
    %1415 = vmatpush1.xpose.msra.mxu0 0.0
    %1416 = vmatprep.subr.mxu0 0.0
    %1417 = vmatpush1.xpose.msra.mxu0 0.0
    %1418 = vmatprep.subr.mxu0 0.0
    %1419 = vmatpush1.xpose.msra.mxu0 0.0
    %1420 = vmatprep.subr.mxu0 0.0
    %1421 = vmatpush1.xpose.msra.mxu0 0.0
    %1422 = vmatprep.subr.mxu0 0.0
    %1423 = vmatpush1.xpose.msra.mxu0 0.0
    %1424 = vmatprep.subr.mxu0 0.0
    %1425 = vmatpush1.xpose.msra.mxu0 0.0
    %1426 = vmatprep.subr.mxu0 0.0
    %1427 = vmatpush1.xpose.msra.mxu0 0.0
    %1428 = vmatprep.subr.mxu0 0.0
    %1429 = vmatpush1.xpose.msra.mxu0 0.0
    %1430 = vmatprep.subr.mxu0 0.0
    %1431 = vmatpush1.xpose.msra.mxu0 0.0
    %1432 = vmatprep.subr.mxu0 0.0
    %1433 = vmatpush1.xpose.msra.mxu0 0.0
    %1434 = vmatprep.subr.mxu0 0.0
    %1435 = vmatpush1.xpose.msra.mxu0 0.0
    %1436 = vmatprep.subr.mxu0 0.0
    %1437 = vmatpush1.xpose.msra.mxu0 0.0
    %1438 = vmatprep.subr.mxu0 0.0
    %1439 = vmatpush1.xpose.msra.mxu0 0.0
    %1440 = vmatprep.subr.mxu0 0.0
    %1441 = vmatpush1.xpose.msra.mxu0 0.0
    %1442 = vmatprep.subr.mxu0 0.0
    %1443 = vmatpush1.xpose.msra.mxu0 0.0
    %1444 = vmatprep.subr.mxu0 0.0
    %1445 = vmatpush1.xpose.msra.mxu0 0.0
    %1446 = vmatprep.mubr.f32.mxu0 0.0
    %1447 = vmatmul.mubr.f32.gmra.mrb[0].mxu0 %v1378
    %v1448 = vpop.f32.mrb[0].mxu0
    %v1449 = vadd.f32 0.0, %v1448
    %v1450 = vpop.f32.mrb[0].mxu0
    %1451 = vdwg.mxu0
    %v1452 = vsel %vm163, %v1449, -inf
    %1453 = vmax.xlane.f32.xlu0 %v1452
    %v1454 = vpop.xlane.xlu0 %1453
    %v1455 = vsub.f32 %v1449, %v1454
    %v1456 = vmul.f32 %v1455, 1.442695
    %v1457 = vpow.pop %v1456
    %v1458 = vsel %vm163, %v1457, 0.0
    %1459 = vadd.xlane.f32.xlu0 %v1458
    %v1460 = vpop.xlane.xlu0 %1459
    %v1461 = vrcp.pop %v1460
    %v1462 = vmul.f32 %v1460, %v1461
    %v1463 = vsub.f32 2.0, %v1462
    %v1464 = vmul.f32 %v1461, %v1463
    %v1465 = vmul.f32 %v1457, %v1464
    %v1466 = vadd.f32 %v1292, %v1465
    %1467 = vrot.lane.b32.xlu0 %v157, 40
    %v1468 = vpop.permute.xlu0 %1467
    %v1471 = vsel %vm163, %v1465, 0
    %1473 = vmatprep.subr.mxu0 0.0
    %1474 = vmatpush1.msra.mxu0 %v1468
    %1475 = vmatprep.subr.mxu0 0.0
    %1476 = vmatpush1.msra.mxu0 0.0
    %1477 = vmatprep.subr.mxu0 0.0
    %1478 = vmatpush1.msra.mxu0 0.0
    %1479 = vmatprep.subr.mxu0 0.0
    %1480 = vmatpush1.msra.mxu0 0.0
    %1481 = vmatprep.subr.mxu0 0.0
    %1482 = vmatpush1.msra.mxu0 0.0
    %1483 = vmatprep.subr.mxu0 0.0
    %1484 = vmatpush1.msra.mxu0 0.0
    %1485 = vmatprep.subr.mxu0 0.0
    %1486 = vmatpush1.msra.mxu0 0.0
    %1487 = vmatprep.subr.mxu0 0.0
    %1488 = vmatpush1.msra.mxu0 0.0
    %1489 = vmatprep.subr.mxu0 0.0
    %1490 = vmatpush1.msra.mxu0 0.0
    %1491 = vmatprep.subr.mxu0 0.0
    %1492 = vmatpush1.msra.mxu0 0.0
    %1493 = vmatprep.subr.mxu0 0.0
    %1494 = vmatpush1.msra.mxu0 0.0
    %1495 = vmatprep.subr.mxu0 0.0
    %1496 = vmatpush1.msra.mxu0 0.0
    %1497 = vmatprep.subr.mxu0 0.0
    %1498 = vmatpush1.msra.mxu0 0.0
    %1499 = vmatprep.subr.mxu0 0.0
    %1500 = vmatpush1.msra.mxu0 0.0
    %1501 = vmatprep.subr.mxu0 0.0
    %1502 = vmatpush1.msra.mxu0 0.0
    %1503 = vmatprep.subr.mxu0 0.0
    %1504 = vmatpush1.msra.mxu0 0.0
    %1505 = vmatprep.subr.mxu0 0.0
    %1506 = vmatpush1.msra.mxu0 0.0
    %1507 = vmatprep.subr.mxu0 0.0
    %1508 = vmatpush1.msra.mxu0 0.0
    %1509 = vmatprep.subr.mxu0 0.0
    %1510 = vmatpush1.msra.mxu0 0.0
    %1511 = vmatprep.subr.mxu0 0.0
    %1512 = vmatpush1.msra.mxu0 0.0
    %1513 = vmatprep.subr.mxu0 0.0
    %1514 = vmatpush1.msra.mxu0 0.0
    %1515 = vmatprep.subr.mxu0 0.0
    %1516 = vmatpush1.msra.mxu0 0.0
    %1517 = vmatprep.subr.mxu0 0.0
    %1518 = vmatpush1.msra.mxu0 0.0
    %1519 = vmatprep.subr.mxu0 0.0
    %1520 = vmatpush1.msra.mxu0 0.0
    %1521 = vmatprep.subr.mxu0 0.0
    %1522 = vmatpush1.msra.mxu0 0.0
    %1523 = vmatprep.subr.mxu0 0.0
    %1524 = vmatpush1.msra.mxu0 0.0
    %1525 = vmatprep.subr.mxu0 0.0
    %1526 = vmatpush1.msra.mxu0 0.0
    %1527 = vmatprep.subr.mxu0 0.0
    %1528 = vmatpush1.msra.mxu0 0.0
    %1529 = vmatprep.subr.mxu0 0.0
    %1530 = vmatpush1.msra.mxu0 0.0
    %1531 = vmatprep.subr.mxu0 0.0
    %1532 = vmatpush1.msra.mxu0 0.0
    %1533 = vmatprep.subr.mxu0 0.0
    %1534 = vmatpush1.msra.mxu0 0.0
    %1535 = vmatprep.subr.mxu0 0.0
    %1536 = vmatpush1.msra.mxu0 0.0
    %1537 = vmatprep.mubr.f32.mxu0 0.0
    %1538 = vmatmul.mubr.f32.gmra.mrb[0].mxu0 %v1471
    %v1539 = vpop.f32.mrb[0].mxu0
    %v1540 = vadd.f32 0.0, %v1539
    %v1541 = vpop.f32.mrb[0].mxu0
    %1542 = vdwg.mxu0
    %1544 = vrot.lane.b32.xlu0 %v1540, 24
    %v1545 = vpop.permute.xlu0 %1544
    %1547 = vst.msk [vmem:[#allocation2 + $0x8] sm:$0xff] %vm853, %v1545
    %v1548 = vmul.f32 %v1466, 0.25
    %1549 = vst.msk [vmem:[#allocation10 + $0x8] sm:$0xff] %vm163, %v1548
    %v1550 = vld [vmem:[#allocation2] sm:$0xff]
    %v1551 = vld [vmem:[#allocation2 + $0x8] sm:$0xff]
    %v1552 = vld [vmem:[#allocation8] sm:$0xff]
    %v1553 = vld [vmem:[#allocation8 + $0x8] sm:$0xff]
    %v1554 = vld [vmem:[#allocation8 + $0x10] sm:$0xff]
    %v1555 = vld [vmem:[#allocation8 + $0x18] sm:$0xff]
    %v1556 = vld [vmem:[%s4] sm:$0x1]
    %v1558 = vlaneseq
    %v1559 = vshrl.u32 %v1558, 7
    %v1560 = vsub.s32 0, %v1559
    %v1561 = vrot.slane %v1556, %v1560
    %v1564 = vsel %vm78, %v1550, 0
    %v1567 = vsel %vm78, %v1551, 0
    %1569 = vmatprep.subr.mxu0 0.0
    %1570 = vmatpush1.msra.mxu0 %v1552
    %1571 = vmatprep.subr.mxu0 0.0
    %1572 = vmatpush1.msra.mxu0 %v1553
    %1573 = vmatprep.subr.mxu0 0.0
    %1574 = vmatpush1.msra.mxu0 %v1554
    %1575 = vmatprep.subr.mxu0 0.0
    %1576 = vmatpush1.msra.mxu0 %v1555
    %1577 = vmatprep.subr.mxu0 0.0
    %1578 = vmatpush1.msra.mxu0 0.0
    %1579 = vmatprep.subr.mxu0 0.0
    %1580 = vmatpush1.msra.mxu0 0.0
    %1581 = vmatprep.subr.mxu0 0.0
    %1582 = vmatpush1.msra.mxu0 0.0
    %1583 = vmatprep.subr.mxu0 0.0
    %1584 = vmatpush1.msra.mxu0 0.0
    %1585 = vmatprep.subr.mxu0 0.0
    %1586 = vmatpush1.msra.mxu0 0.0
    %1587 = vmatprep.subr.mxu0 0.0
    %1588 = vmatpush1.msra.mxu0 0.0
    %1589 = vmatprep.subr.mxu0 0.0
    %1590 = vmatpush1.msra.mxu0 0.0
    %1591 = vmatprep.subr.mxu0 0.0
    %1592 = vmatpush1.msra.mxu0 0.0
    %1593 = vmatprep.subr.mxu0 0.0
    %1594 = vmatpush1.msra.mxu0 0.0
    %1595 = vmatprep.subr.mxu0 0.0
    %1596 = vmatpush1.msra.mxu0 0.0
    %1597 = vmatprep.subr.mxu0 0.0
    %1598 = vmatpush1.msra.mxu0 0.0
    %1599 = vmatprep.subr.mxu0 0.0
    %1600 = vmatpush1.msra.mxu0 0.0
    %1601 = vmatprep.subr.mxu0 0.0
    %1602 = vmatpush1.msra.mxu0 0.0
    %1603 = vmatprep.subr.mxu0 0.0
    %1604 = vmatpush1.msra.mxu0 0.0
    %1605 = vmatprep.subr.mxu0 0.0
    %1606 = vmatpush1.msra.mxu0 0.0
    %1607 = vmatprep.subr.mxu0 0.0
    %1608 = vmatpush1.msra.mxu0 0.0
    %1609 = vmatprep.subr.mxu0 0.0
    %1610 = vmatpush1.msra.mxu0 0.0
    %1611 = vmatprep.subr.mxu0 0.0
    %1612 = vmatpush1.msra.mxu0 0.0
    %1613 = vmatprep.subr.mxu0 0.0
    %1614 = vmatpush1.msra.mxu0 0.0
    %1615 = vmatprep.subr.mxu0 0.0
    %1616 = vmatpush1.msra.mxu0 0.0
    %1617 = vmatprep.subr.mxu0 0.0
    %1618 = vmatpush1.msra.mxu0 0.0
    %1619 = vmatprep.subr.mxu0 0.0
    %1620 = vmatpush1.msra.mxu0 0.0
    %1621 = vmatprep.subr.mxu0 0.0
    %1622 = vmatpush1.msra.mxu0 0.0
    %1623 = vmatprep.subr.mxu0 0.0
    %1624 = vmatpush1.msra.mxu0 0.0
    %1625 = vmatprep.subr.mxu0 0.0
    %1626 = vmatpush1.msra.mxu0 0.0
    %1627 = vmatprep.subr.mxu0 0.0
    %1628 = vmatpush1.msra.mxu0 0.0
    %1629 = vmatprep.subr.mxu0 0.0
    %1630 = vmatpush1.msra.mxu0 0.0
    %1631 = vmatprep.subr.mxu0 0.0
    %1632 = vmatpush1.msra.mxu0 0.0
    %1633 = vmatprep.mubr.f32.mxu0 0.0
    %1634 = vmatmul.mubr.f32.gmra.mrb[0].mxu0 %v1564
    %v1635 = vpop.f32.mrb[0].mxu0
    %v1636 = vadd.f32 %v1561, %v1635
    %v1637 = vpop.f32.mrb[0].mxu0
    %1638 = vmatprep.mubr.f32.mxu0 0.0
    %1639 = vmatmul.mubr.f32.gmra.mrb[0].mxu0 %v1567
    %v1640 = vpop.f32.mrb[0].mxu0
    %v1641 = vadd.f32 %v1561, %v1640
    %v1642 = vpop.f32.mrb[0].mxu0
    %1643 = vdwg.mxu0
    %1644 = vst.msk [vmem:[#allocation9] sm:$0xff] %vm78, %v1636
    %1645 = vst.msk [vmem:[#allocation9 + $0x8] sm:$0xff] %vm78, %v1641
    // Predicated region
    $region34: #{mha_forward.1} parent=1 // pred_check
      _
    $region35: #{mha_forward.1} parent=1 // pred_check_branch
      %1647 = sbr.rel (0) target = $region37
    $region36: #{mha_forward.1} parent=1 // pred_region
      %s1649 = ssub.s32 256, 256
      %1650 = vsyncadd [#allocation5], %s1649
      %s1651 = sshll.u32 [#allocation9], 4
      %s1652 = int_to_ptr.vmem [resolvable:$true] %s1651
      %1657 = dma.vmem_to_hbm [thread:$0]  %s1652, 256, %s5, [#allocation5], 128, 128, 8
    $region37: #{mha_forward.1} parent=1 // pred_fallthru
      _
    // Predicated region
    $region38: #{mha_forward.1} parent=1 // pred_check
      _
    $region39: #{mha_forward.1} parent=1 // pred_check_branch
      %1659 = sbr.rel (0) target = $region41
    $region40: #{mha_forward.1} parent=1 // pred_region
      %s1661 = ssub.s32 256, 256
      %1662 = vsyncadd [#allocation11], %s1661
      %s1663 = sshll.u32 [#allocation10], 4
      %s1664 = int_to_ptr.vmem [resolvable:$true] %s1663
      %1669 = dma.vmem_to_hbm [thread:$0]  %s1664, 256, %s6, [#allocation11], 128, 128, 8
    $region41: #{mha_forward.1} parent=1 // pred_fallthru
      _
    // Predicated region
    $region42: #{mha_forward.1} parent=1 // pred_check
      _
    $region43: #{mha_forward.1} parent=1 // pred_check_branch
      %1671 = sbr.rel (0) target = $region45
    $region44: #{mha_forward.1} parent=1 // pred_region
      %1672 = dma.done [#allocation5], 256
    $region45: #{mha_forward.1} parent=1 // pred_fallthru
      _
    // Predicated region
    $region46: #{mha_forward.1} parent=1 // pred_check
      _
    $region47: #{mha_forward.1} parent=1 // pred_check_branch
      %1674 = sbr.rel (0) target = $region49
    $region48: #{mha_forward.1} parent=1 // pred_region
      %1675 = dma.done [#allocation11], 256
    $region49: #{mha_forward.1} parent=1 // pred_fallthru
      _
    %1676 = vsyncpa [#allocation4], 1
    %1677 = vsyncpa [#allocation7], 1
    %1678 = vsyncpa [#allocation5], 1
    %1679 = vsyncpa [#allocation11], 1

</llo_original>
